<compile_context>
chip_gen: v5e
topology: v5e:2x2
jax: 0.10.0
libtpu: 0.0.40
codegen_flags: <defaults>
</compile_context>

<pallas_src>
import jax
import jax.numpy as jnp
from jax.experimental import pallas as pl
from jax.experimental.pallas import tpu as pltpu

BN_EPS = 1e-5
HIDDEN = 60          # per-power hidden width of the reference module
H_PAD = 64           # padded per-power width (sub-lane friendly)
CAT = 3 * H_PAD      # padded activation width between layers: 3*60 -> 192


# --------------------------------------------------------------------------------------
# Fused kernel: 3 x (MixHopConv + folded BatchNorm) + final Linear, activations as values.
# --------------------------------------------------------------------------------------
def mixhop_fused_kernel(adj_ref, x_ref,
                        w1_ref, b1_ref, w2_ref, b2_ref, w3_ref, b3_ref,
                        wl_ref, bl_ref, o_ref):
    adj = adj_ref[...]                                      # bf16 [N, N] — loaded once
    h = x_ref[...]                                          # bf16 [N, F_pad]

    for w_ref, b_ref in ((w1_ref, b1_ref), (w2_ref, b2_ref), (w3_ref, b3_ref)):
        # Fused per-power projection: one [F_in, 192]-wide matmul (BN scale pre-folded).
        t = jnp.dot(h, w_ref[...], preferred_element_type=jnp.float32)   # f32 [N, 192]
        t0 = t[:, :H_PAD]                                                 # f32 [N, 64]
        t12 = t[:, H_PAD:].astype(jnp.bfloat16)                           # bf16 [N, 128]

        # Fused independent first hops (one 128-wide adj pass), then the dependent hop.
        p12 = jnp.dot(adj, t12, preferred_element_type=jnp.float32)      # f32 [N, 128]
        h1 = p12[:, :H_PAD]                                               # f32 [N, 64]
        p2 = p12[:, H_PAD:].astype(jnp.bfloat16)                          # bf16 [N, 64]
        h2 = jnp.dot(adj, p2, preferred_element_type=jnp.float32)        # f32 [N, 64]

        # Concat + (BN-folded) bias; pad lanes (60:64 of each slab) stay exactly zero
        # because the corresponding weight columns and bias entries are zero.
        hcat = jnp.concatenate([t0, h1, h2], axis=-1) + b_ref[...]        # f32 [N, 192]
        h = hcat.astype(jnp.bfloat16)

    # Final Linear into the 128-lane-padded output slab (single unmasked store).
    o_ref[...] = (jnp.dot(h, wl_ref[...], preferred_element_type=jnp.float32)
                  + bl_ref[...])


def _vmem_limit_bytes():
    """~85% of physical VMEM: ~54 MiB on v7x, ~109 MiB on v5e/v6e; safe fallback 48 MiB."""
    try:
        cap = pltpu.get_tpu_info().vmem_capacity_bytes
        return min(int(cap * 0.85), 110 * 1024 * 1024)
    except Exception:
        return 48 * 1024 * 1024


def mixhop_forward(prep, x_bf16, adj_bf16):
    """prep: dict of BN-folded, padded, concatenated bf16 weights (+ f32 biases)."""
    n = x_bf16.shape[0]
    c_pad = prep["lin"]["w"].shape[1]
    args = (adj_bf16, x_bf16,
            prep["l1"]["w"], prep["l1"]["b"],
            prep["l2"]["w"], prep["l2"]["b"],
            prep["l3"]["w"], prep["l3"]["b"],
            prep["lin"]["w"], prep["lin"]["b"])

    vmem_spec = pl.BlockSpec(memory_space=pltpu.MemorySpace.VMEM)
    return pl.pallas_call(
        mixhop_fused_kernel,
        out_shape=jax.ShapeDtypeStruct((n, c_pad), jnp.float32),
        in_specs=[vmem_spec] * len(args),
        out_specs=vmem_spec,
        compiler_params=pltpu.CompilerParams(vmem_limit_bytes=_vmem_limit_bytes()),
    )(*args)


# --------------------------------------------------------------------------------------
# Host-side graph / parameter preparation.
# --------------------------------------------------------------------------------------
def _round_up(v, m):
    return ((v + m - 1) // m) * m


def _pad_to(arr, shape):
    out = jnp.zeros(shape, arr.dtype)
    return out.at[tuple(slice(0, s) for s in arr.shape)].set(arr)


def gcn_norm_dense(edge_index, num_nodes):
    """Dense A_hat = D^{-1/2}(A + I)D^{-1/2} (gcn_norm with self-loops, weight=1)."""
    src, dst = edge_index
    adj = jnp.zeros((num_nodes, num_nodes), jnp.float32)
    adj = adj.at[src, dst].set(1.0)
    adj = adj.at[dst, src].set(1.0)                         # undirected graph
    adj = adj + jnp.eye(num_nodes, dtype=jnp.float32)       # self loops
    deg = adj.sum(axis=1)
    dinv = jnp.where(deg > 0, jax.lax.rsqrt(deg), 0.0)
    return adj * dinv[:, None] * dinv[None, :]


def init_params(key, num_features, num_classes, hidden=HIDDEN):
    """Deterministic parameters mirroring the module's shapes (non-trivial BN stats)."""
    dims_in = [num_features, 3 * hidden, 3 * hidden]
    params = {}
    for layer in range(3):
        f_in = dims_in[layer]
        ws = []
        for _ in range(3):
            key, sub = jax.random.split(key)
            ws.append(jax.random.normal(sub, (f_in, hidden), jnp.float32)
                      * (1.0 / jnp.sqrt(f_in)))
        key, kb, kg, kbe, km, kv = jax.random.split(key, 6)
        params[f"conv{layer + 1}"] = dict(
            w0=ws[0], w1=ws[1], w2=ws[2],
            bias=0.01 * jax.random.normal(kb, (1, 3 * hidden), jnp.float32))
        params[f"norm{layer + 1}"] = dict(
            gamma=1.0 + 0.1 * jax.random.normal(kg, (1, 3 * hidden), jnp.float32),
            beta=0.1 * jax.random.normal(kbe, (1, 3 * hidden), jnp.float32),
            mean=0.1 * jax.random.normal(km, (1, 3 * hidden), jnp.float32),
            var=jax.random.uniform(kv, (1, 3 * hidden), jnp.float32, 0.5, 1.5))
    key, sub = jax.random.split(key)
    params["lin"] = dict(
        w=jax.random.normal(sub, (3 * hidden, num_classes), jnp.float32)
        * (1.0 / jnp.sqrt(3 * hidden)),
        b=jnp.zeros((1, num_classes), jnp.float32))
    return params


def fold_and_pad(params, num_features, num_classes):
    """Fold eval-mode BatchNorm into weights/bias, fuse the 3 per-power weights into one
    [F_in_pad, 192] weight per layer, pad everything to lane-friendly shapes, cast bf16."""
    f_pad = _round_up(num_features, 128)
    c_out_pad = _round_up(num_classes, 128)
    in_pads = [f_pad, CAT, CAT]
    prep = {}
    for layer in range(1, 4):
        c, nrm = params[f"conv{layer}"], params[f"norm{layer}"]
        scale = nrm["gamma"] * jax.lax.rsqrt(nrm["var"] + BN_EPS)        # (1, 180)
        bias_f = (c["bias"] - nrm["mean"]) * scale + nrm["beta"]         # (1, 180)
        in_pad = in_pads[layer - 1]
        wcat = jnp.zeros((in_pad, CAT), jnp.float32)
        bpad = jnp.zeros((1, CAT), jnp.float32)
        for p, w in enumerate((c["w0"], c["w1"], c["w2"])):
            w = w * scale[:, p * HIDDEN:(p + 1) * HIDDEN]                # fold BN scale
            col0 = p * H_PAD
            if layer == 1:
                wcat = wcat.at[0:num_features, col0:col0 + HIDDEN].set(w)
            else:
                # Input rows follow the padded 3x64 concat layout of the previous layer.
                for q in range(3):
                    wcat = wcat.at[q * H_PAD:q * H_PAD + HIDDEN,
                                   col0:col0 + HIDDEN].set(
                        w[q * HIDDEN:(q + 1) * HIDDEN])
            bpad = bpad.at[:, col0:col0 + HIDDEN].set(
                bias_f[:, p * HIDDEN:(p + 1) * HIDDEN])
        prep[f"l{layer}"] = dict(w=wcat.astype(jnp.bfloat16), b=bpad)

    wl = jnp.zeros((CAT, c_out_pad), jnp.float32)
    for q in range(3):
        wl = wl.at[q * H_PAD:q * H_PAD + HIDDEN, 0:num_classes].set(
            params["lin"]["w"][q * HIDDEN:(q + 1) * HIDDEN])
    bl = jnp.zeros((1, c_out_pad), jnp.float32).at[:, 0:num_classes].set(params["lin"]["b"])
    prep["lin"] = dict(w=wl.astype(jnp.bfloat16), b=bl)
    return prep


def reference_forward(params, x, adj):
    """Pure-JAX f32 reference following the original (unfolded, unpadded) math."""
    h = x
    for layer in range(1, 4):
        c, nrm = params[f"conv{layer}"], params[f"norm{layer}"]
        x1 = adj @ h
        x2 = adj @ x1
        hcat = jnp.concatenate([h @ c["w0"], x1 @ c["w1"], x2 @ c["w2"]], -1) + c["bias"]
        h = (hcat - nrm["mean"]) * jax.lax.rsqrt(nrm["var"] + BN_EPS) * nrm["gamma"] \
            + nrm["beta"]
    return h @ params["lin"]["w"] + params["lin"]["b"]


# --------------------------------------------------------------------------------------
if __name__ == "__main__":
    # Small synthetic stand-in for Cora: 128 nodes, 64 features, 7 classes.
    N, F_IN, N_CLASSES, N_EDGES = 128, 64, 7, 512

    key = jax.random.PRNGKey(0)
    k_x, k_src, k_dst, k_params = jax.random.split(key, 4)

    x = jax.random.normal(k_x, (N, F_IN), jnp.float32)
    src = jax.random.randint(k_src, (N_EDGES,), 0, N)
    dst = jax.random.randint(k_dst, (N_EDGES,), 0, N)
    edge_index = jnp.stack([src, dst], axis=0)

    adj = gcn_norm_dense(edge_index, N)
    params = init_params(k_params, F_IN, N_CLASSES)
    prep = fold_and_pad(params, F_IN, N_CLASSES)

    # Pad node dim to a multiple of 128 and features to a multiple of 128 (full-tile,
    # unmasked adj matmuls and output stores). Padded adj rows/cols are zero, so real
    # rows are unaffected; padded output rows are discarded below.
    n_pad = _round_up(N, 128)
    f_pad = _round_up(F_IN, 128)
    x_pad = _pad_to(x, (n_pad, f_pad)).astype(jnp.bfloat16)
    adj_bf = _pad_to(adj, (n_pad, n_pad)).astype(jnp.bfloat16)

    fwd = jax.jit(lambda p, xx, aa: mixhop_forward(p, xx, aa)[:N, :N_CLASSES])
    out = fwd(prep, x_pad, adj_bf)
    jax.block_until_ready(out)

    ref = reference_forward(params, x, adj)
    err = float(jnp.max(jnp.abs(out - ref)))

    assert out.shape == (N, N_CLASSES) and out.dtype == jnp.float32
    assert err < 1e-1, f"max abs err vs f32 reference: {err}"
    print("KERNEL_OK")
</pallas_src>

<mosaic_0001>
module attributes {stable_mosaic.version = 11 : i64} {
  func.func @mixhop_fused_kernel(%arg0: memref<128x128xbf16, #tpu.memory_space<vmem>>, %arg1: memref<128x128xbf16, #tpu.memory_space<vmem>>, %arg2: memref<128x192xbf16, #tpu.memory_space<vmem>>, %arg3: memref<1x192xf32, #tpu.memory_space<vmem>>, %arg4: memref<192x192xbf16, #tpu.memory_space<vmem>>, %arg5: memref<1x192xf32, #tpu.memory_space<vmem>>, %arg6: memref<192x192xbf16, #tpu.memory_space<vmem>>, %arg7: memref<1x192xf32, #tpu.memory_space<vmem>>, %arg8: memref<192x128xbf16, #tpu.memory_space<vmem>>, %arg9: memref<1x128xf32, #tpu.memory_space<vmem>>, %arg10: memref<128x128xf32, #tpu.memory_space<vmem>>) attributes {dimension_semantics = [], scalar_prefetch = 0 : i64, scratch_operands = 0 : i64, tpu.core_type = #tpu.core_type<tc>} {
    %c0 = arith.constant 0 : index
    %c0_0 = arith.constant 0 : index
    %0 = vector.load %arg0[%c0, %c0_0] : memref<128x128xbf16, #tpu.memory_space<vmem>>, vector<128x128xbf16>
    %c0_1 = arith.constant 0 : index
    %c0_2 = arith.constant 0 : index
    %1 = vector.load %arg1[%c0_1, %c0_2] : memref<128x128xbf16, #tpu.memory_space<vmem>>, vector<128x128xbf16>
    %c0_3 = arith.constant 0 : index
    %c0_4 = arith.constant 0 : index
    %2 = vector.load %arg2[%c0_3, %c0_4] : memref<128x192xbf16, #tpu.memory_space<vmem>>, vector<128x192xbf16>
    %cst = arith.constant dense<0.000000e+00> : vector<128x192xf32>
    %3 = tpu.matmul %1, %2, %cst {dimension_numbers = #tpu.dot_dimension_numbers<[1], [0], [0], [1], [0, 0, 1, 1], [], []>} : vector<128x128xbf16>, vector<128x192xbf16>, vector<128x192xf32> -> vector<128x192xf32>
    %4 = vector.extract_strided_slice %3 {offsets = [0, 0], sizes = [128, 64], strides = [1, 1]} : vector<128x192xf32> to vector<128x64xf32>
    %5 = vector.extract_strided_slice %3 {offsets = [0, 64], sizes = [128, 128], strides = [1, 1]} : vector<128x192xf32> to vector<128x128xf32>
    %6 = arith.truncf %5 : vector<128x128xf32> to vector<128x128xbf16>
    %cst_5 = arith.constant dense<0.000000e+00> : vector<128x128xf32>
    %7 = tpu.matmul %0, %6, %cst_5 {dimension_numbers = #tpu.dot_dimension_numbers<[1], [0], [0], [1], [0, 0, 1, 1], [], []>} : vector<128x128xbf16>, vector<128x128xbf16>, vector<128x128xf32> -> vector<128x128xf32>
    %8 = vector.extract_strided_slice %7 {offsets = [0, 0], sizes = [128, 64], strides = [1, 1]} : vector<128x128xf32> to vector<128x64xf32>
    %9 = vector.extract_strided_slice %7 {offsets = [0, 64], sizes = [128, 64], strides = [1, 1]} : vector<128x128xf32> to vector<128x64xf32>
    %10 = arith.truncf %9 : vector<128x64xf32> to vector<128x64xbf16>
    %cst_6 = arith.constant dense<0.000000e+00> : vector<128x64xf32>
    %11 = tpu.matmul %0, %10, %cst_6 {dimension_numbers = #tpu.dot_dimension_numbers<[1], [0], [0], [1], [0, 0, 1, 1], [], []>} : vector<128x128xbf16>, vector<128x64xbf16>, vector<128x64xf32> -> vector<128x64xf32>
    %12 = tpu.concatenate %4, %8, %11 in 1 : vector<128x64xf32>, vector<128x64xf32>, vector<128x64xf32> -> vector<128x192xf32>
    %c0_7 = arith.constant 0 : index
    %c0_8 = arith.constant 0 : index
    %13 = vector.load %arg3[%c0_7, %c0_8] : memref<1x192xf32, #tpu.memory_space<vmem>>, vector<1x192xf32>
    %14 = vector.broadcast %13 : vector<1x192xf32> to vector<128x192xf32>
    %15 = arith.addf %12, %14 : vector<128x192xf32>
    %16 = arith.truncf %15 : vector<128x192xf32> to vector<128x192xbf16>
    %c0_9 = arith.constant 0 : index
    %c0_10 = arith.constant 0 : index
    %17 = vector.load %arg4[%c0_9, %c0_10] : memref<192x192xbf16, #tpu.memory_space<vmem>>, vector<192x192xbf16>
    %cst_11 = arith.constant dense<0.000000e+00> : vector<128x192xf32>
    %18 = tpu.matmul %16, %17, %cst_11 {dimension_numbers = #tpu.dot_dimension_numbers<[1], [0], [0], [1], [0, 0, 1, 1], [], []>} : vector<128x192xbf16>, vector<192x192xbf16>, vector<128x192xf32> -> vector<128x192xf32>
    %19 = vector.extract_strided_slice %18 {offsets = [0, 0], sizes = [128, 64], strides = [1, 1]} : vector<128x192xf32> to vector<128x64xf32>
    %20 = vector.extract_strided_slice %18 {offsets = [0, 64], sizes = [128, 128], strides = [1, 1]} : vector<128x192xf32> to vector<128x128xf32>
    %21 = arith.truncf %20 : vector<128x128xf32> to vector<128x128xbf16>
    %cst_12 = arith.constant dense<0.000000e+00> : vector<128x128xf32>
    %22 = tpu.matmul %0, %21, %cst_12 {dimension_numbers = #tpu.dot_dimension_numbers<[1], [0], [0], [1], [0, 0, 1, 1], [], []>} : vector<128x128xbf16>, vector<128x128xbf16>, vector<128x128xf32> -> vector<128x128xf32>
    %23 = vector.extract_strided_slice %22 {offsets = [0, 0], sizes = [128, 64], strides = [1, 1]} : vector<128x128xf32> to vector<128x64xf32>
    %24 = vector.extract_strided_slice %22 {offsets = [0, 64], sizes = [128, 64], strides = [1, 1]} : vector<128x128xf32> to vector<128x64xf32>
    %25 = arith.truncf %24 : vector<128x64xf32> to vector<128x64xbf16>
    %cst_13 = arith.constant dense<0.000000e+00> : vector<128x64xf32>
    %26 = tpu.matmul %0, %25, %cst_13 {dimension_numbers = #tpu.dot_dimension_numbers<[1], [0], [0], [1], [0, 0, 1, 1], [], []>} : vector<128x128xbf16>, vector<128x64xbf16>, vector<128x64xf32> -> vector<128x64xf32>
    %27 = tpu.concatenate %19, %23, %26 in 1 : vector<128x64xf32>, vector<128x64xf32>, vector<128x64xf32> -> vector<128x192xf32>
    %c0_14 = arith.constant 0 : index
    %c0_15 = arith.constant 0 : index
    %28 = vector.load %arg5[%c0_14, %c0_15] : memref<1x192xf32, #tpu.memory_space<vmem>>, vector<1x192xf32>
    %29 = vector.broadcast %28 : vector<1x192xf32> to vector<128x192xf32>
    %30 = arith.addf %27, %29 : vector<128x192xf32>
    %31 = arith.truncf %30 : vector<128x192xf32> to vector<128x192xbf16>
    %c0_16 = arith.constant 0 : index
    %c0_17 = arith.constant 0 : index
    %32 = vector.load %arg6[%c0_16, %c0_17] : memref<192x192xbf16, #tpu.memory_space<vmem>>, vector<192x192xbf16>
    %cst_18 = arith.constant dense<0.000000e+00> : vector<128x192xf32>
    %33 = tpu.matmul %31, %32, %cst_18 {dimension_numbers = #tpu.dot_dimension_numbers<[1], [0], [0], [1], [0, 0, 1, 1], [], []>} : vector<128x192xbf16>, vector<192x192xbf16>, vector<128x192xf32> -> vector<128x192xf32>
    %34 = vector.extract_strided_slice %33 {offsets = [0, 0], sizes = [128, 64], strides = [1, 1]} : vector<128x192xf32> to vector<128x64xf32>
    %35 = vector.extract_strided_slice %33 {offsets = [0, 64], sizes = [128, 128], strides = [1, 1]} : vector<128x192xf32> to vector<128x128xf32>
    %36 = arith.truncf %35 : vector<128x128xf32> to vector<128x128xbf16>
    %cst_19 = arith.constant dense<0.000000e+00> : vector<128x128xf32>
    %37 = tpu.matmul %0, %36, %cst_19 {dimension_numbers = #tpu.dot_dimension_numbers<[1], [0], [0], [1], [0, 0, 1, 1], [], []>} : vector<128x128xbf16>, vector<128x128xbf16>, vector<128x128xf32> -> vector<128x128xf32>
    %38 = vector.extract_strided_slice %37 {offsets = [0, 0], sizes = [128, 64], strides = [1, 1]} : vector<128x128xf32> to vector<128x64xf32>
    %39 = vector.extract_strided_slice %37 {offsets = [0, 64], sizes = [128, 64], strides = [1, 1]} : vector<128x128xf32> to vector<128x64xf32>
    %40 = arith.truncf %39 : vector<128x64xf32> to vector<128x64xbf16>
    %cst_20 = arith.constant dense<0.000000e+00> : vector<128x64xf32>
    %41 = tpu.matmul %0, %40, %cst_20 {dimension_numbers = #tpu.dot_dimension_numbers<[1], [0], [0], [1], [0, 0, 1, 1], [], []>} : vector<128x128xbf16>, vector<128x64xbf16>, vector<128x64xf32> -> vector<128x64xf32>
    %42 = tpu.concatenate %34, %38, %41 in 1 : vector<128x64xf32>, vector<128x64xf32>, vector<128x64xf32> -> vector<128x192xf32>
    %c0_21 = arith.constant 0 : index
    %c0_22 = arith.constant 0 : index
    %43 = vector.load %arg7[%c0_21, %c0_22] : memref<1x192xf32, #tpu.memory_space<vmem>>, vector<1x192xf32>
    %44 = vector.broadcast %43 : vector<1x192xf32> to vector<128x192xf32>
    %45 = arith.addf %42, %44 : vector<128x192xf32>
    %46 = arith.truncf %45 : vector<128x192xf32> to vector<128x192xbf16>
    %c0_23 = arith.constant 0 : index
    %c0_24 = arith.constant 0 : index
    %47 = vector.load %arg8[%c0_23, %c0_24] : memref<192x128xbf16, #tpu.memory_space<vmem>>, vector<192x128xbf16>
    %cst_25 = arith.constant dense<0.000000e+00> : vector<128x128xf32>
    %48 = tpu.matmul %46, %47, %cst_25 {dimension_numbers = #tpu.dot_dimension_numbers<[1], [0], [0], [1], [0, 0, 1, 1], [], []>} : vector<128x192xbf16>, vector<192x128xbf16>, vector<128x128xf32> -> vector<128x128xf32>
    %c0_26 = arith.constant 0 : index
    %c0_27 = arith.constant 0 : index
    %49 = vector.load %arg9[%c0_26, %c0_27] : memref<1x128xf32, #tpu.memory_space<vmem>>, vector<1x128xf32>
    %50 = vector.broadcast %49 : vector<1x128xf32> to vector<128x128xf32>
    %51 = arith.addf %48, %50 : vector<128x128xf32>
    %c0_28 = arith.constant 0 : index
    %c0_29 = arith.constant 0 : index
    %52 = vector.load %arg10[%c0_28, %c0_29] : memref<128x128xf32, #tpu.memory_space<vmem>>, vector<128x128xf32>
    tpu.vector_store %arg10[%c0_28, %c0_29], %51 {strides = array<i32>} : memref<128x128xf32, #tpu.memory_space<vmem>>, vector<128x128xf32>,
    return
  }
}

</mosaic_0001>

<llo_original>
// kernel: _lambda_.1
$region0: #{_lambda_.1}
  #allocation0 [shape = 'u32[]', space=smem, size = 0x4, offset = 0x4, fixed_abs, tag = 'smem constant byte address 0x4 - core index']
  #allocation1 [shape = 'u32[72,128]{1,0:T(1,128)}', space=vmem, size = 0x9000, scoped, tag = 'internal scratch']
  %s0 = inlined_call_operand.hbm [shape: bf16[128,128], index: 0, kind: input, shape index: {}]
  %s1 = inlined_call_operand.hbm [shape: bf16[128,128], index: 1, kind: input, shape index: {}]
  %s2 = inlined_call_operand.vmem [shape: bf16[128,192], index: 2, kind: input, shape index: {}]
  %s3 = inlined_call_operand.vmem [shape: f32[1,192], index: 3, kind: input, shape index: {}]
  %s4 = inlined_call_operand.vmem [shape: bf16[192,192], index: 4, kind: input, shape index: {}]
  %s5 = inlined_call_operand.vmem [shape: f32[1,192], index: 5, kind: input, shape index: {}]
  %s6 = inlined_call_operand.hbm [shape: bf16[192,192], index: 6, kind: input, shape index: {}]
  %s7 = inlined_call_operand.vmem [shape: f32[1,192], index: 7, kind: input, shape index: {}]
  %s8 = inlined_call_operand.hbm [shape: bf16[192,128], index: 8, kind: input, shape index: {}]
  %s9 = inlined_call_operand.vmem [shape: f32[1,128], index: 9, kind: input, shape index: {}]
  %s10 = inlined_call_operand.vmem [shape: f32[128,128], index: 10, kind: output, shape index: {}]
  %s11 = sld [smem:[#allocation0]]
  $region66: #{_lambda_.1} parent=0
    _
  %s13 = ssub.s32 1, %s11
  %s14 = scalar_select 0, %s13, %s11
  $region1: #{_lambda_.1} parent=0
    #allocation2 [shape = 'u8[32768]{0}', space=vmem, size = 0x8000, scoped, tag = 'input window, operand 0, single buffered']
    #allocation3 [shape = 's32[1]{0}', space=sflag, size = 0x4, scoped, tag = 'scoped memory for _lambda_.1']
    #allocation4 [shape = 'u8[32768]{0}', space=vmem, size = 0x8000, scoped, tag = 'input window, operand 1, single buffered']
    #allocation5 [shape = 's32[1]{0}', space=sflag, size = 0x4, scoped, tag = 'scoped memory for _lambda_.1']
    #allocation6 [shape = 'u8[98304]{0}', space=vmem, size = 0x18000, scoped, tag = 'input window, operand 6, single buffered']
    #allocation7 [shape = 'u8[49152]{0}', space=vmem, size = 0xc000, scoped, tag = 'input window, operand 8, single buffered']
    #allocation8 [shape = 's32[1]{0}', space=sflag, size = 0x4, scoped, tag = 'scoped memory for _lambda_.1']
    %15 = vsyncpa [#allocation3], 0
    %16 = vsyncpa [#allocation5], 0
    %17 = vsyncpa [#allocation8], 0
    // Predicated region
    $region2: #{_lambda_.1} parent=1 // pred_check
      _
    $region3: #{_lambda_.1} parent=1 // pred_check_branch
      %19 = sbr.rel (0) target = $region5
    $region4: #{_lambda_.1} parent=1 // pred_region
      %21 = vsyncadd [#allocation3], 0
      %s22 = sshll.u32 %s0, 4
      %s23 = int_to_ptr.hbm [resolvable:$true] %s22
      %s24 = sshll.u32 [#allocation2], 4
      %s25 = int_to_ptr.vmem [resolvable:$true] %s24
      %30 = dma.hbm_to_vmem [thread:$0]  %s23, 1024, %s25, [#allocation3], 64, 64, 4
    $region5: #{_lambda_.1} parent=1 // pred_fallthru
      _
    // Predicated region
    $region6: #{_lambda_.1} parent=1 // pred_check
      _
    $region7: #{_lambda_.1} parent=1 // pred_check_branch
      %32 = sbr.rel (0) target = $region9
    $region8: #{_lambda_.1} parent=1 // pred_region
      %34 = vsyncadd [#allocation5], 0
      %s35 = sshll.u32 %s1, 4
      %s36 = int_to_ptr.hbm [resolvable:$true] %s35
      %s37 = sshll.u32 [#allocation4], 4
      %s38 = int_to_ptr.vmem [resolvable:$true] %s37
      %43 = dma.hbm_to_vmem [thread:$0]  %s36, 1024, %s38, [#allocation5], 64, 64, 4
    $region9: #{_lambda_.1} parent=1 // pred_fallthru
      _
    // Predicated region
    $region10: #{_lambda_.1} parent=1 // pred_check
      _
    $region11: #{_lambda_.1} parent=1 // pred_check_branch
      %45 = sbr.rel (0) target = $region13
    $region12: #{_lambda_.1} parent=1 // pred_region
      _
    $region13: #{_lambda_.1} parent=1 // pred_fallthru
      _
    // Predicated region
    $region14: #{_lambda_.1} parent=1 // pred_check
      _
    $region15: #{_lambda_.1} parent=1 // pred_check_branch
      %47 = sbr.rel (0) target = $region17
    $region16: #{_lambda_.1} parent=1 // pred_region
      _
    $region17: #{_lambda_.1} parent=1 // pred_fallthru
      _
    // Predicated region
    $region18: #{_lambda_.1} parent=1 // pred_check
      _
    $region19: #{_lambda_.1} parent=1 // pred_check_branch
      %49 = sbr.rel (0) target = $region21
    $region20: #{_lambda_.1} parent=1 // pred_region
      _
    $region21: #{_lambda_.1} parent=1 // pred_fallthru
      _
    // Predicated region
    $region22: #{_lambda_.1} parent=1 // pred_check
      _
    $region23: #{_lambda_.1} parent=1 // pred_check_branch
      %51 = sbr.rel (0) target = $region25
    $region24: #{_lambda_.1} parent=1 // pred_region
      _
    $region25: #{_lambda_.1} parent=1 // pred_fallthru
      _
    // Predicated region
    $region26: #{_lambda_.1} parent=1 // pred_check
      _
    $region27: #{_lambda_.1} parent=1 // pred_check_branch
      %53 = sbr.rel (0) target = $region29
    $region28: #{_lambda_.1} parent=1 // pred_region
      %55 = vsyncadd [#allocation5], 0
      %s56 = sshll.u32 %s6, 4
      %s57 = int_to_ptr.hbm [resolvable:$true] %s56
      %s58 = sshll.u32 [#allocation6], 4
      %s59 = int_to_ptr.vmem [resolvable:$true] %s58
      %64 = dma.hbm_to_vmem [thread:$0]  %s57, 3072, %s59, [#allocation5], 128, 128, 8
    $region29: #{_lambda_.1} parent=1 // pred_fallthru
      _
    // Predicated region
    $region30: #{_lambda_.1} parent=1 // pred_check
      _
    $region31: #{_lambda_.1} parent=1 // pred_check_branch
      %66 = sbr.rel (0) target = $region33
    $region32: #{_lambda_.1} parent=1 // pred_region
      _
    $region33: #{_lambda_.1} parent=1 // pred_fallthru
      _
    // Predicated region
    $region34: #{_lambda_.1} parent=1 // pred_check
      _
    $region35: #{_lambda_.1} parent=1 // pred_check_branch
      %68 = sbr.rel (0) target = $region37
    $region36: #{_lambda_.1} parent=1 // pred_region
      %70 = vsyncadd [#allocation8], 0
      %s71 = sshll.u32 %s8, 4
      %s72 = int_to_ptr.hbm [resolvable:$true] %s71
      %s73 = sshll.u32 [#allocation7], 4
      %s74 = int_to_ptr.vmem [resolvable:$true] %s73
      %79 = dma.hbm_to_vmem [thread:$0]  %s72, 1536, %s74, [#allocation8], 64, 64, 4
    $region37: #{_lambda_.1} parent=1 // pred_fallthru
      _
    // Predicated region
    $region38: #{_lambda_.1} parent=1 // pred_check
      _
    $region39: #{_lambda_.1} parent=1 // pred_check_branch
      %81 = sbr.rel (0) target = $region41
    $region40: #{_lambda_.1} parent=1 // pred_region
      _
    $region41: #{_lambda_.1} parent=1 // pred_fallthru
      _
    // Predicated region
    $region42: #{_lambda_.1} parent=1 // pred_check
      _
    $region43: #{_lambda_.1} parent=1 // pred_check_branch
      %83 = sbr.rel (0) target = $region45
    $region44: #{_lambda_.1} parent=1 // pred_region
      %85 = dma.done [#allocation3], 1024
    $region45: #{_lambda_.1} parent=1 // pred_fallthru
      _
    // Predicated region
    $region46: #{_lambda_.1} parent=1 // pred_check
      _
    $region47: #{_lambda_.1} parent=1 // pred_check_branch
      %87 = sbr.rel (0) target = $region49
    $region48: #{_lambda_.1} parent=1 // pred_region
      %89 = dma.done [#allocation5], 1024
    $region49: #{_lambda_.1} parent=1 // pred_fallthru
      _
    // Predicated region
    $region50: #{_lambda_.1} parent=1 // pred_check
      _
    $region51: #{_lambda_.1} parent=1 // pred_check_branch
      %91 = sbr.rel (0) target = $region53
    $region52: #{_lambda_.1} parent=1 // pred_region
      %93 = dma.done [#allocation5], 3072
    $region53: #{_lambda_.1} parent=1 // pred_fallthru
      _
    // Predicated region
    $region54: #{_lambda_.1} parent=1 // pred_check
      _
    $region55: #{_lambda_.1} parent=1 // pred_check_branch
      %95 = sbr.rel (0) target = $region57
    $region56: #{_lambda_.1} parent=1 // pred_region
      %97 = dma.done [#allocation8], 1536
    $region57: #{_lambda_.1} parent=1 // pred_fallthru
      _
    %v99 = vld [vmem:[#allocation2] sm:$0xf]
    %v100 = vld [vmem:[#allocation2 + $0x4] sm:$0xf]
    %v101 = vld [vmem:[#allocation2 + $0x8] sm:$0xf]
    %v102 = vld [vmem:[#allocation2 + $0xc] sm:$0xf]
    %v103 = vld [vmem:[#allocation2 + $0x10] sm:$0xf]
    %v104 = vld [vmem:[#allocation2 + $0x14] sm:$0xf]
    %v105 = vld [vmem:[#allocation2 + $0x18] sm:$0xf]
    %v106 = vld [vmem:[#allocation2 + $0x1c] sm:$0xf]
    %v107 = vld [vmem:[#allocation2 + $0x20] sm:$0xf]
    %v108 = vld [vmem:[#allocation2 + $0x24] sm:$0xf]
    %v109 = vld [vmem:[#allocation2 + $0x28] sm:$0xf]
    %v110 = vld [vmem:[#allocation2 + $0x2c] sm:$0xf]
    %v111 = vld [vmem:[#allocation2 + $0x30] sm:$0xf]
    %v112 = vld [vmem:[#allocation2 + $0x34] sm:$0xf]
    %v113 = vld [vmem:[#allocation2 + $0x38] sm:$0xf]
    %v114 = vld [vmem:[#allocation2 + $0x3c] sm:$0xf]
    %v115 = vld [vmem:[#allocation4] sm:$0xf]
    %v116 = vld [vmem:[#allocation4 + $0x4] sm:$0xf]
    %v117 = vld [vmem:[#allocation4 + $0x8] sm:$0xf]
    %v118 = vld [vmem:[#allocation4 + $0xc] sm:$0xf]
    %v119 = vld [vmem:[#allocation4 + $0x10] sm:$0xf]
    %v120 = vld [vmem:[#allocation4 + $0x14] sm:$0xf]
    %v121 = vld [vmem:[#allocation4 + $0x18] sm:$0xf]
    %v122 = vld [vmem:[#allocation4 + $0x1c] sm:$0xf]
    %v123 = vld [vmem:[#allocation4 + $0x20] sm:$0xf]
    %v124 = vld [vmem:[#allocation4 + $0x24] sm:$0xf]
    %v125 = vld [vmem:[#allocation4 + $0x28] sm:$0xf]
    %v126 = vld [vmem:[#allocation4 + $0x2c] sm:$0xf]
    %v127 = vld [vmem:[#allocation4 + $0x30] sm:$0xf]
    %v128 = vld [vmem:[#allocation4 + $0x34] sm:$0xf]
    %v129 = vld [vmem:[#allocation4 + $0x38] sm:$0xf]
    %v130 = vld [vmem:[#allocation4 + $0x3c] sm:$0xf]
    %v131 = vld [vmem:[%s2] sm:$0xff]
    %v132 = vld [vmem:[%s2 + $0x8] sm:$0xff]
    %v133 = vld [vmem:[%s2 + $0x10] sm:$0xff]
    %v134 = vld [vmem:[%s2 + $0x18] sm:$0xff]
    %v135 = vld [vmem:[%s2 + $0x20] sm:$0xff]
    %v136 = vld [vmem:[%s2 + $0x28] sm:$0xff]
    %v137 = vld [vmem:[%s2 + $0x30] sm:$0xff]
    %v138 = vld [vmem:[%s2 + $0x38] sm:$0xff]
    %v139 = vld [vmem:[%s2 + $0x40] sm:$0xff]
    %v140 = vld [vmem:[%s2 + $0x48] sm:$0xff]
    %v141 = vld [vmem:[%s2 + $0x50] sm:$0xff]
    %v142 = vld [vmem:[%s2 + $0x58] sm:$0xff]
    %v143 = vld [vmem:[%s2 + $0x60] sm:$0xff]
    %v144 = vld [vmem:[%s2 + $0x68] sm:$0xff]
    %v145 = vld [vmem:[%s2 + $0x70] sm:$0xff]
    %v146 = vld [vmem:[%s2 + $0x78] sm:$0xff]
    %v163 = vunpack.c.l.b16 %v115
    %v164 = vunpack.c.l.b16 %v116
    %v165 = vunpack.c.l.b16 %v117
    %v166 = vunpack.c.l.b16 %v118
    %v167 = vunpack.c.l.b16 %v119
    %v168 = vunpack.c.l.b16 %v120
    %v169 = vunpack.c.l.b16 %v121
    %v170 = vunpack.c.l.b16 %v122
    %v171 = vunpack.c.l.b16 %v123
    %v172 = vunpack.c.l.b16 %v124
    %v173 = vunpack.c.l.b16 %v125
    %v174 = vunpack.c.l.b16 %v126
    %v175 = vunpack.c.l.b16 %v127
    %v176 = vunpack.c.l.b16 %v128
    %v177 = vunpack.c.l.b16 %v129
    %v178 = vunpack.c.l.b16 %v130
    %v179 = vpack.c.b16 %v164, %v163
    %v180 = vpack.c.b16 %v166, %v165
    %v181 = vpack.c.b16 %v168, %v167
    %v182 = vpack.c.b16 %v170, %v169
    %v183 = vpack.c.b16 %v172, %v171
    %v184 = vpack.c.b16 %v174, %v173
    %v185 = vpack.c.b16 %v176, %v175
    %v186 = vpack.c.b16 %v178, %v177
    %v211 = vunpack.c.l.b16 %v131
    %v212 = vunpack.c.h.b16 %v131
    %v213 = vunpack.c.l.b16 %v132
    %v214 = vunpack.c.h.b16 %v132
    %v215 = vunpack.c.l.b16 %v133
    %v216 = vunpack.c.h.b16 %v133
    %v217 = vunpack.c.l.b16 %v134
    %v218 = vunpack.c.h.b16 %v134
    %v219 = vunpack.c.l.b16 %v135
    %v220 = vunpack.c.h.b16 %v135
    %v221 = vunpack.c.l.b16 %v136
    %v222 = vunpack.c.h.b16 %v136
    %v223 = vunpack.c.l.b16 %v137
    %v224 = vunpack.c.h.b16 %v137
    %v225 = vunpack.c.l.b16 %v138
    %v226 = vunpack.c.h.b16 %v138
    %v227 = vunpack.c.l.b16 %v139
    %v228 = vunpack.c.h.b16 %v139
    %v229 = vunpack.c.l.b16 %v140
    %v230 = vunpack.c.h.b16 %v140
    %v231 = vunpack.c.l.b16 %v141
    %v232 = vunpack.c.h.b16 %v141
    %v233 = vunpack.c.l.b16 %v142
    %v234 = vunpack.c.h.b16 %v142
    %v235 = vunpack.c.l.b16 %v143
    %v236 = vunpack.c.h.b16 %v143
    %v237 = vunpack.c.l.b16 %v144
    %v238 = vunpack.c.h.b16 %v144
    %v239 = vunpack.c.l.b16 %v145
    %v240 = vunpack.c.h.b16 %v145
    %v241 = vunpack.c.l.b16 %v146
    %v242 = vunpack.c.h.b16 %v146
    %v243 = vpack.c.b16 %v213, %v211
    %v244 = vpack.c.b16 %v214, %v212
    %v245 = vpack.c.b16 %v217, %v215
    %v246 = vpack.c.b16 %v218, %v216
    %v247 = vpack.c.b16 %v221, %v219
    %v248 = vpack.c.b16 %v222, %v220
    %v249 = vpack.c.b16 %v225, %v223
    %v250 = vpack.c.b16 %v226, %v224
    %v251 = vpack.c.b16 %v229, %v227
    %v252 = vpack.c.b16 %v230, %v228
    %v253 = vpack.c.b16 %v233, %v231
    %v254 = vpack.c.b16 %v234, %v232
    %v255 = vpack.c.b16 %v237, %v235
    %v256 = vpack.c.b16 %v238, %v236
    %v257 = vpack.c.b16 %v241, %v239
    %v258 = vpack.c.b16 %v242, %v240
    %275 = vmatpush.bf16.msra.mxu0 %v257
    %276 = vmatpush.bf16.msra.mxu0 %v255
    %277 = vmatpush.bf16.msra.mxu0 %v253
    %278 = vmatpush.bf16.msra.mxu0 %v251
    %279 = vmatpush.bf16.msra.mxu0 %v249
    %280 = vmatpush.bf16.msra.mxu0 %v247
    %281 = vmatpush.bf16.msra.mxu0 %v245
    %282 = vmatpush.bf16.msra.mxu0 %v243
    %283 = vmatmul.bf16.gmra.mxu0 %v179
    %v284 = vpop.f32.mrf.mxu0
    %v285 = vadd.f32 0.0, %v284
    %v286 = vpop.f32.mrf.mxu0
    %v287 = vadd.f32 0.0, %v286
    %288 = vmatmul.bf16.gmra.mxu0 %v180
    %v289 = vpop.f32.mrf.mxu0
    %v290 = vadd.f32 0.0, %v289
    %v291 = vpop.f32.mrf.mxu0
    %v292 = vadd.f32 0.0, %v291
    %293 = vmatmul.bf16.gmra.mxu0 %v181
    %v294 = vpop.f32.mrf.mxu0
    %v295 = vadd.f32 0.0, %v294
    %v296 = vpop.f32.mrf.mxu0
    %v297 = vadd.f32 0.0, %v296
    %298 = vmatmul.bf16.gmra.mxu0 %v182
    %v299 = vpop.f32.mrf.mxu0
    %v300 = vadd.f32 0.0, %v299
    %v301 = vpop.f32.mrf.mxu0
    %v302 = vadd.f32 0.0, %v301
    %303 = vmatmul.bf16.gmra.mxu0 %v183
    %v304 = vpop.f32.mrf.mxu0
    %v305 = vadd.f32 0.0, %v304
    %v306 = vpop.f32.mrf.mxu0
    %v307 = vadd.f32 0.0, %v306
    %308 = vmatmul.bf16.gmra.mxu0 %v184
    %v309 = vpop.f32.mrf.mxu0
    %v310 = vadd.f32 0.0, %v309
    %v311 = vpop.f32.mrf.mxu0
    %v312 = vadd.f32 0.0, %v311
    %313 = vmatmul.bf16.gmra.mxu0 %v185
    %v314 = vpop.f32.mrf.mxu0
    %v315 = vadd.f32 0.0, %v314
    %v316 = vpop.f32.mrf.mxu0
    %v317 = vadd.f32 0.0, %v316
    %318 = vmatmul.bf16.gmra.mxu0 %v186
    %v319 = vpop.f32.mrf.mxu0
    %v320 = vadd.f32 0.0, %v319
    %v321 = vpop.f32.mrf.mxu0
    %v322 = vadd.f32 0.0, %v321
    %323 = vdwg.mxu0
    %324 = vmatpush.bf16.msra.mxu0 %v258
    %325 = vmatpush.bf16.msra.mxu0 %v256
    %326 = vmatpush.bf16.msra.mxu0 %v254
    %327 = vmatpush.bf16.msra.mxu0 %v252
    %328 = vmatpush.bf16.msra.mxu0 %v250
    %329 = vmatpush.bf16.msra.mxu0 %v248
    %330 = vmatpush.bf16.msra.mxu0 %v246
    %331 = vmatpush.bf16.msra.mxu0 %v244
    %332 = vmatmul.bf16.gmra.mxu0 %v179
    %v333 = vpop.f32.mrf.mxu0
    %v334 = vadd.f32 0.0, %v333
    %v335 = vpop.f32.mrf.mxu0
    %v336 = vadd.f32 0.0, %v335
    %337 = vmatmul.bf16.gmra.mxu0 %v180
    %v338 = vpop.f32.mrf.mxu0
    %v339 = vadd.f32 0.0, %v338
    %v340 = vpop.f32.mrf.mxu0
    %v341 = vadd.f32 0.0, %v340
    %342 = vmatmul.bf16.gmra.mxu0 %v181
    %v343 = vpop.f32.mrf.mxu0
    %v344 = vadd.f32 0.0, %v343
    %v345 = vpop.f32.mrf.mxu0
    %v346 = vadd.f32 0.0, %v345
    %347 = vmatmul.bf16.gmra.mxu0 %v182
    %v348 = vpop.f32.mrf.mxu0
    %v349 = vadd.f32 0.0, %v348
    %v350 = vpop.f32.mrf.mxu0
    %v351 = vadd.f32 0.0, %v350
    %352 = vmatmul.bf16.gmra.mxu0 %v183
    %v353 = vpop.f32.mrf.mxu0
    %v354 = vadd.f32 0.0, %v353
    %v355 = vpop.f32.mrf.mxu0
    %v356 = vadd.f32 0.0, %v355
    %357 = vmatmul.bf16.gmra.mxu0 %v184
    %v358 = vpop.f32.mrf.mxu0
    %v359 = vadd.f32 0.0, %v358
    %v360 = vpop.f32.mrf.mxu0
    %v361 = vadd.f32 0.0, %v360
    %362 = vmatmul.bf16.gmra.mxu0 %v185
    %v363 = vpop.f32.mrf.mxu0
    %v364 = vadd.f32 0.0, %v363
    %v365 = vpop.f32.mrf.mxu0
    %v366 = vadd.f32 0.0, %v365
    %367 = vmatmul.bf16.gmra.mxu0 %v186
    %v368 = vpop.f32.mrf.mxu0
    %v369 = vadd.f32 0.0, %v368
    %v370 = vpop.f32.mrf.mxu0
    %v371 = vadd.f32 0.0, %v370
    %372 = vdwg.mxu0
    %v373 = vpack.c.bf16 %v287, %v285
    %v374 = vpack.c.bf16 %v336, %v334
    %v375 = vpack.c.bf16 %v292, %v290
    %v376 = vpack.c.bf16 %v341, %v339
    %v377 = vpack.c.bf16 %v297, %v295
    %v378 = vpack.c.bf16 %v346, %v344
    %v379 = vpack.c.bf16 %v302, %v300
    %v380 = vpack.c.bf16 %v351, %v349
    %v381 = vpack.c.bf16 %v307, %v305
    %v382 = vpack.c.bf16 %v356, %v354
    %v383 = vpack.c.bf16 %v312, %v310
    %v384 = vpack.c.bf16 %v361, %v359
    %v385 = vpack.c.bf16 %v317, %v315
    %v386 = vpack.c.bf16 %v366, %v364
    %v387 = vpack.c.bf16 %v322, %v320
    %v388 = vpack.c.bf16 %v371, %v369
    %v405 = vunpack.c.l.b16 %v99
    %v406 = vunpack.c.l.b16 %v100
    %v407 = vunpack.c.l.b16 %v101
    %v408 = vunpack.c.l.b16 %v102
    %v409 = vunpack.c.l.b16 %v103
    %v410 = vunpack.c.l.b16 %v104
    %v411 = vunpack.c.l.b16 %v105
    %v412 = vunpack.c.l.b16 %v106
    %v413 = vunpack.c.l.b16 %v107
    %v414 = vunpack.c.l.b16 %v108
    %v415 = vunpack.c.l.b16 %v109
    %v416 = vunpack.c.l.b16 %v110
    %v417 = vunpack.c.l.b16 %v111
    %v418 = vunpack.c.l.b16 %v112
    %v419 = vunpack.c.l.b16 %v113
    %v420 = vunpack.c.l.b16 %v114
    %v421 = vpack.c.b16 %v406, %v405
    %v422 = vpack.c.b16 %v408, %v407
    %v423 = vpack.c.b16 %v410, %v409
    %v424 = vpack.c.b16 %v412, %v411
    %v425 = vpack.c.b16 %v414, %v413
    %v426 = vpack.c.b16 %v416, %v415
    %v427 = vpack.c.b16 %v418, %v417
    %v428 = vpack.c.b16 %v420, %v419
    %453 = vrot.lane.b32.xlu0 %v373, 64
    %v454 = vpop.permute.xlu0 %453
    %455 = vrot.lane.b32.xlu0 %v374, 64
    %v456 = vpop.permute.xlu0 %455
    %457 = vrot.lane.b32.xlu0 %v375, 64
    %v458 = vpop.permute.xlu0 %457
    %459 = vrot.lane.b32.xlu0 %v376, 64
    %v460 = vpop.permute.xlu0 %459
    %461 = vrot.lane.b32.xlu0 %v377, 64
    %v462 = vpop.permute.xlu0 %461
    %463 = vrot.lane.b32.xlu0 %v378, 64
    %v464 = vpop.permute.xlu0 %463
    %465 = vrot.lane.b32.xlu0 %v379, 64
    %v466 = vpop.permute.xlu0 %465
    %467 = vrot.lane.b32.xlu0 %v380, 64
    %v468 = vpop.permute.xlu0 %467
    %469 = vrot.lane.b32.xlu0 %v381, 64
    %v470 = vpop.permute.xlu0 %469
    %471 = vrot.lane.b32.xlu0 %v382, 64
    %v472 = vpop.permute.xlu0 %471
    %473 = vrot.lane.b32.xlu0 %v383, 64
    %v474 = vpop.permute.xlu0 %473
    %475 = vrot.lane.b32.xlu0 %v384, 64
    %v476 = vpop.permute.xlu0 %475
    %477 = vrot.lane.b32.xlu0 %v385, 64
    %v478 = vpop.permute.xlu0 %477
    %479 = vrot.lane.b32.xlu0 %v386, 64
    %v480 = vpop.permute.xlu0 %479
    %481 = vrot.lane.b32.xlu0 %v387, 64
    %v482 = vpop.permute.xlu0 %481
    %483 = vrot.lane.b32.xlu0 %v388, 64
    %v484 = vpop.permute.xlu0 %483
    %vm485 = vcmask 523264
    %v486 = vsel %vm485, %v454, %v456
    %v487 = vsel %vm485, %v458, %v460
    %v488 = vsel %vm485, %v462, %v464
    %v489 = vsel %vm485, %v466, %v468
    %v490 = vsel %vm485, %v470, %v472
    %v491 = vsel %vm485, %v474, %v476
    %v492 = vsel %vm485, %v478, %v480
    %v493 = vsel %vm485, %v482, %v484
    %502 = vmatpush.bf16.msra.mxu0 %v493
    %503 = vmatpush.bf16.msra.mxu0 %v492
    %504 = vmatpush.bf16.msra.mxu0 %v491
    %505 = vmatpush.bf16.msra.mxu0 %v490
    %506 = vmatpush.bf16.msra.mxu0 %v489
    %507 = vmatpush.bf16.msra.mxu0 %v488
    %508 = vmatpush.bf16.msra.mxu0 %v487
    %509 = vmatpush.bf16.msra.mxu0 %v486
    %510 = vmatmul.bf16.gmra.mxu0 %v421
    %v511 = vpop.f32.mrf.mxu0
    %v512 = vadd.f32 0.0, %v511
    %v513 = vpop.f32.mrf.mxu0
    %v514 = vadd.f32 0.0, %v513
    %515 = vmatmul.bf16.gmra.mxu0 %v422
    %v516 = vpop.f32.mrf.mxu0
    %v517 = vadd.f32 0.0, %v516
    %v518 = vpop.f32.mrf.mxu0
    %v519 = vadd.f32 0.0, %v518
    %520 = vmatmul.bf16.gmra.mxu0 %v423
    %v521 = vpop.f32.mrf.mxu0
    %v522 = vadd.f32 0.0, %v521
    %v523 = vpop.f32.mrf.mxu0
    %v524 = vadd.f32 0.0, %v523
    %525 = vmatmul.bf16.gmra.mxu0 %v424
    %v526 = vpop.f32.mrf.mxu0
    %v527 = vadd.f32 0.0, %v526
    %v528 = vpop.f32.mrf.mxu0
    %v529 = vadd.f32 0.0, %v528
    %530 = vmatmul.bf16.gmra.mxu0 %v425
    %v531 = vpop.f32.mrf.mxu0
    %v532 = vadd.f32 0.0, %v531
    %v533 = vpop.f32.mrf.mxu0
    %v534 = vadd.f32 0.0, %v533
    %535 = vmatmul.bf16.gmra.mxu0 %v426
    %v536 = vpop.f32.mrf.mxu0
    %v537 = vadd.f32 0.0, %v536
    %v538 = vpop.f32.mrf.mxu0
    %v539 = vadd.f32 0.0, %v538
    %540 = vmatmul.bf16.gmra.mxu0 %v427
    %v541 = vpop.f32.mrf.mxu0
    %v542 = vadd.f32 0.0, %v541
    %v543 = vpop.f32.mrf.mxu0
    %v544 = vadd.f32 0.0, %v543
    %545 = vmatmul.bf16.gmra.mxu0 %v428
    %v546 = vpop.f32.mrf.mxu0
    %v547 = vadd.f32 0.0, %v546
    %v548 = vpop.f32.mrf.mxu0
    %v549 = vadd.f32 0.0, %v548
    %550 = vdwg.mxu0
    %v551 = vpack.c.bf16 %v514, %v512
    %v552 = vpack.c.bf16 %v519, %v517
    %v553 = vpack.c.bf16 %v524, %v522
    %v554 = vpack.c.bf16 %v529, %v527
    %v555 = vpack.c.bf16 %v534, %v532
    %v556 = vpack.c.bf16 %v539, %v537
    %v557 = vpack.c.bf16 %v544, %v542
    %v558 = vpack.c.bf16 %v549, %v547
    %567 = vrot.lane.b32.xlu0 %v551, 64
    %v568 = vpop.permute.xlu0 %567
    %569 = vrot.lane.b32.xlu0 %v552, 64
    %v570 = vpop.permute.xlu0 %569
    %571 = vrot.lane.b32.xlu0 %v553, 64
    %v572 = vpop.permute.xlu0 %571
    %573 = vrot.lane.b32.xlu0 %v554, 64
    %v574 = vpop.permute.xlu0 %573
    %575 = vrot.lane.b32.xlu0 %v555, 64
    %v576 = vpop.permute.xlu0 %575
    %577 = vrot.lane.b32.xlu0 %v556, 64
    %v578 = vpop.permute.xlu0 %577
    %579 = vrot.lane.b32.xlu0 %v557, 64
    %v580 = vpop.permute.xlu0 %579
    %581 = vrot.lane.b32.xlu0 %v558, 64
    %v582 = vpop.permute.xlu0 %581
    %591 = vmatpush.bf16.msra.mxu0 %v582
    %592 = vmatpush.bf16.msra.mxu0 %v580
    %593 = vmatpush.bf16.msra.mxu0 %v578
    %594 = vmatpush.bf16.msra.mxu0 %v576
    %595 = vmatpush.bf16.msra.mxu0 %v574
    %596 = vmatpush.bf16.msra.mxu0 %v572
    %597 = vmatpush.bf16.msra.mxu0 %v570
    %598 = vmatpush.bf16.msra.mxu0 %v568
    %599 = vmatmul.bf16.gmra.mxu0 %v421
    %v600 = vpop.f32.mrf.mxu0
    %v601 = vadd.f32 0.0, %v600
    %v602 = vpop.f32.mrf.mxu0
    %v603 = vadd.f32 0.0, %v602
    %604 = vmatmul.bf16.gmra.mxu0 %v422
    %v605 = vpop.f32.mrf.mxu0
    %v606 = vadd.f32 0.0, %v605
    %v607 = vpop.f32.mrf.mxu0
    %v608 = vadd.f32 0.0, %v607
    %609 = vmatmul.bf16.gmra.mxu0 %v423
    %v610 = vpop.f32.mrf.mxu0
    %v611 = vadd.f32 0.0, %v610
    %v612 = vpop.f32.mrf.mxu0
    %v613 = vadd.f32 0.0, %v612
    %614 = vmatmul.bf16.gmra.mxu0 %v424
    %v615 = vpop.f32.mrf.mxu0
    %v616 = vadd.f32 0.0, %v615
    %v617 = vpop.f32.mrf.mxu0
    %v618 = vadd.f32 0.0, %v617
    %619 = vmatmul.bf16.gmra.mxu0 %v425
    %v620 = vpop.f32.mrf.mxu0
    %v621 = vadd.f32 0.0, %v620
    %v622 = vpop.f32.mrf.mxu0
    %v623 = vadd.f32 0.0, %v622
    %624 = vmatmul.bf16.gmra.mxu0 %v426
    %v625 = vpop.f32.mrf.mxu0
    %v626 = vadd.f32 0.0, %v625
    %v627 = vpop.f32.mrf.mxu0
    %v628 = vadd.f32 0.0, %v627
    %629 = vmatmul.bf16.gmra.mxu0 %v427
    %v630 = vpop.f32.mrf.mxu0
    %v631 = vadd.f32 0.0, %v630
    %v632 = vpop.f32.mrf.mxu0
    %v633 = vadd.f32 0.0, %v632
    %634 = vmatmul.bf16.gmra.mxu0 %v428
    %v635 = vpop.f32.mrf.mxu0
    %v636 = vadd.f32 0.0, %v635
    %v637 = vpop.f32.mrf.mxu0
    %v638 = vadd.f32 0.0, %v637
    %639 = vdwg.mxu0
    %656 = vrot.lane.b32.xlu0 %v512, 64
    %v657 = vpop.permute.xlu0 %656
    %658 = vrot.lane.b32.xlu0 %v514, 64
    %v659 = vpop.permute.xlu0 %658
    %660 = vrot.lane.b32.xlu0 %v517, 64
    %v661 = vpop.permute.xlu0 %660
    %662 = vrot.lane.b32.xlu0 %v519, 64
    %v663 = vpop.permute.xlu0 %662
    %664 = vrot.lane.b32.xlu0 %v522, 64
    %v665 = vpop.permute.xlu0 %664
    %666 = vrot.lane.b32.xlu0 %v524, 64
    %v667 = vpop.permute.xlu0 %666
    %668 = vrot.lane.b32.xlu0 %v527, 64
    %v669 = vpop.permute.xlu0 %668
    %670 = vrot.lane.b32.xlu0 %v529, 64
    %v671 = vpop.permute.xlu0 %670
    %672 = vrot.lane.b32.xlu0 %v532, 64
    %v673 = vpop.permute.xlu0 %672
    %674 = vrot.lane.b32.xlu0 %v534, 64
    %v675 = vpop.permute.xlu0 %674
    %676 = vrot.lane.b32.xlu0 %v537, 64
    %v677 = vpop.permute.xlu0 %676
    %678 = vrot.lane.b32.xlu0 %v539, 64
    %v679 = vpop.permute.xlu0 %678
    %680 = vrot.lane.b32.xlu0 %v542, 64
    %v681 = vpop.permute.xlu0 %680
    %682 = vrot.lane.b32.xlu0 %v544, 64
    %v683 = vpop.permute.xlu0 %682
    %684 = vrot.lane.b32.xlu0 %v547, 64
    %v685 = vpop.permute.xlu0 %684
    %686 = vrot.lane.b32.xlu0 %v549, 64
    %v687 = vpop.permute.xlu0 %686
    %vm704 = vcmask 523264
    %v705 = vsel %vm704, %v285, %v657
    %v706 = vsel %vm704, %v287, %v659
    %v707 = vsel %vm704, %v290, %v661
    %v708 = vsel %vm704, %v292, %v663
    %v709 = vsel %vm704, %v295, %v665
    %v710 = vsel %vm704, %v297, %v667
    %v711 = vsel %vm704, %v300, %v669
    %v712 = vsel %vm704, %v302, %v671
    %v713 = vsel %vm704, %v305, %v673
    %v714 = vsel %vm704, %v307, %v675
    %v715 = vsel %vm704, %v310, %v677
    %v716 = vsel %vm704, %v312, %v679
    %v717 = vsel %vm704, %v315, %v681
    %v718 = vsel %vm704, %v317, %v683
    %v719 = vsel %vm704, %v320, %v685
    %v720 = vsel %vm704, %v322, %v687
    %v721 = vld [vmem:[%s3] sm:$0x3]
    %v723 = vperm.slane %v721, 0
    %v724 = vperm.slane %v721, 1
    %v727 = vadd.f32 %v705, %v723
    %v728 = vadd.f32 %v601, %v724
    %v729 = vadd.f32 %v706, %v723
    %v730 = vadd.f32 %v603, %v724
    %v731 = vadd.f32 %v707, %v723
    %v732 = vadd.f32 %v606, %v724
    %v733 = vadd.f32 %v708, %v723
    %v734 = vadd.f32 %v608, %v724
    %v735 = vadd.f32 %v709, %v723
    %v736 = vadd.f32 %v611, %v724
    %v737 = vadd.f32 %v710, %v723
    %v738 = vadd.f32 %v613, %v724
    %v739 = vadd.f32 %v711, %v723
    %v740 = vadd.f32 %v616, %v724
    %v741 = vadd.f32 %v712, %v723
    %v742 = vadd.f32 %v618, %v724
    %v743 = vadd.f32 %v713, %v723
    %v744 = vadd.f32 %v621, %v724
    %v745 = vadd.f32 %v714, %v723
    %v746 = vadd.f32 %v623, %v724
    %v747 = vadd.f32 %v715, %v723
    %v748 = vadd.f32 %v626, %v724
    %v749 = vadd.f32 %v716, %v723
    %v750 = vadd.f32 %v628, %v724
    %v751 = vadd.f32 %v717, %v723
    %v752 = vadd.f32 %v631, %v724
    %v753 = vadd.f32 %v718, %v723
    %v754 = vadd.f32 %v633, %v724
    %v755 = vadd.f32 %v719, %v723
    %v756 = vadd.f32 %v636, %v724
    %v757 = vadd.f32 %v720, %v723
    %v758 = vadd.f32 %v638, %v724
    %v759 = vpack.c.bf16 %v729, %v727
    %v760 = vpack.c.bf16 %v730, %v728
    %v761 = vpack.c.bf16 %v733, %v731
    %v762 = vpack.c.bf16 %v734, %v732
    %v763 = vpack.c.bf16 %v737, %v735
    %v764 = vpack.c.bf16 %v738, %v736
    %v765 = vpack.c.bf16 %v741, %v739
    %v766 = vpack.c.bf16 %v742, %v740
    %v767 = vpack.c.bf16 %v745, %v743
    %v768 = vpack.c.bf16 %v746, %v744
    %v769 = vpack.c.bf16 %v749, %v747
    %v770 = vpack.c.bf16 %v750, %v748
    %v771 = vpack.c.bf16 %v753, %v751
    %v772 = vpack.c.bf16 %v754, %v752
    %v773 = vpack.c.bf16 %v757, %v755
    %v774 = vpack.c.bf16 %v758, %v756
    %v775 = vld [vmem:[%s4] sm:$0xff]
    %v776 = vld [vmem:[%s4 + $0x8] sm:$0xff]
    %v777 = vld [vmem:[%s4 + $0x10] sm:$0xff]
    %v778 = vld [vmem:[%s4 + $0x18] sm:$0xff]
    %v779 = vld [vmem:[%s4 + $0x20] sm:$0xff]
    %v780 = vld [vmem:[%s4 + $0x28] sm:$0xff]
    %v781 = vld [vmem:[%s4 + $0x30] sm:$0xff]
    %v782 = vld [vmem:[%s4 + $0x38] sm:$0xff]
    %v783 = vld [vmem:[%s4 + $0x40] sm:$0xff]
    %v784 = vld [vmem:[%s4 + $0x48] sm:$0xff]
    %v785 = vld [vmem:[%s4 + $0x50] sm:$0xff]
    %v786 = vld [vmem:[%s4 + $0x58] sm:$0xff]
    %v787 = vld [vmem:[%s4 + $0x60] sm:$0xff]
    %v788 = vld [vmem:[%s4 + $0x68] sm:$0xff]
    %v789 = vld [vmem:[%s4 + $0x70] sm:$0xff]
    %v790 = vld [vmem:[%s4 + $0x78] sm:$0xff]
    %v791 = vld [vmem:[%s4 + $0x80] sm:$0xff]
    %v792 = vld [vmem:[%s4 + $0x88] sm:$0xff]
    %v793 = vld [vmem:[%s4 + $0x90] sm:$0xff]
    %v794 = vld [vmem:[%s4 + $0x98] sm:$0xff]
    %v795 = vld [vmem:[%s4 + $0xa0] sm:$0xff]
    %v796 = vld [vmem:[%s4 + $0xa8] sm:$0xff]
    %v797 = vld [vmem:[%s4 + $0xb0] sm:$0xff]
    %v798 = vld [vmem:[%s4 + $0xb8] sm:$0xff]
    %v823 = vunpack.c.l.b16 %v775
    %v824 = vunpack.c.h.b16 %v775
    %v825 = vunpack.c.l.b16 %v776
    %v826 = vunpack.c.h.b16 %v776
    %v827 = vunpack.c.l.b16 %v777
    %v828 = vunpack.c.h.b16 %v777
    %v829 = vunpack.c.l.b16 %v778
    %v830 = vunpack.c.h.b16 %v778
    %v831 = vunpack.c.l.b16 %v779
    %v832 = vunpack.c.h.b16 %v779
    %v833 = vunpack.c.l.b16 %v780
    %v834 = vunpack.c.h.b16 %v780
    %v835 = vunpack.c.l.b16 %v781
    %v836 = vunpack.c.h.b16 %v781
    %v837 = vunpack.c.l.b16 %v782
    %v838 = vunpack.c.h.b16 %v782
    %v839 = vunpack.c.l.b16 %v783
    %v840 = vunpack.c.h.b16 %v783
    %v841 = vunpack.c.l.b16 %v784
    %v842 = vunpack.c.h.b16 %v784
    %v843 = vunpack.c.l.b16 %v785
    %v844 = vunpack.c.h.b16 %v785
    %v845 = vunpack.c.l.b16 %v786
    %v846 = vunpack.c.h.b16 %v786
    %v847 = vunpack.c.l.b16 %v787
    %v848 = vunpack.c.h.b16 %v787
    %v849 = vunpack.c.l.b16 %v788
    %v850 = vunpack.c.h.b16 %v788
    %v851 = vunpack.c.l.b16 %v789
    %v852 = vunpack.c.h.b16 %v789
    %v853 = vunpack.c.l.b16 %v790
    %v854 = vunpack.c.h.b16 %v790
    %v855 = vunpack.c.l.b16 %v791
    %v856 = vunpack.c.h.b16 %v791
    %v857 = vunpack.c.l.b16 %v792
    %v858 = vunpack.c.h.b16 %v792
    %v859 = vunpack.c.l.b16 %v793
    %v860 = vunpack.c.h.b16 %v793
    %v861 = vunpack.c.l.b16 %v794
    %v862 = vunpack.c.h.b16 %v794
    %v863 = vunpack.c.l.b16 %v795
    %v864 = vunpack.c.h.b16 %v795
    %v865 = vunpack.c.l.b16 %v796
    %v866 = vunpack.c.h.b16 %v796
    %v867 = vunpack.c.l.b16 %v797
    %v868 = vunpack.c.h.b16 %v797
    %v869 = vunpack.c.l.b16 %v798
    %v870 = vunpack.c.h.b16 %v798
    %v871 = vpack.c.b16 %v825, %v823
    %v872 = vpack.c.b16 %v826, %v824
    %v873 = vpack.c.b16 %v829, %v827
    %v874 = vpack.c.b16 %v830, %v828
    %v875 = vpack.c.b16 %v833, %v831
    %v876 = vpack.c.b16 %v834, %v832
    %v877 = vpack.c.b16 %v837, %v835
    %v878 = vpack.c.b16 %v838, %v836
    %v879 = vpack.c.b16 %v841, %v839
    %v880 = vpack.c.b16 %v842, %v840
    %v881 = vpack.c.b16 %v845, %v843
    %v882 = vpack.c.b16 %v846, %v844
    %v883 = vpack.c.b16 %v849, %v847
    %v884 = vpack.c.b16 %v850, %v848
    %v885 = vpack.c.b16 %v853, %v851
    %v886 = vpack.c.b16 %v854, %v852
    %v887 = vpack.c.b16 %v857, %v855
    %v888 = vpack.c.b16 %v858, %v856
    %v889 = vpack.c.b16 %v861, %v859
    %v890 = vpack.c.b16 %v862, %v860
    %v891 = vpack.c.b16 %v865, %v863
    %v892 = vpack.c.b16 %v866, %v864
    %v893 = vpack.c.b16 %v869, %v867
    %v894 = vpack.c.b16 %v870, %v868
    %v920 = vsel %vm704, %v760, 0
    %v923 = vsel %vm704, %v762, 0
    %v926 = vsel %vm704, %v764, 0
    %v929 = vsel %vm704, %v766, 0
    %v932 = vsel %vm704, %v768, 0
    %v935 = vsel %vm704, %v770, 0
    %v938 = vsel %vm704, %v772, 0
    %v941 = vsel %vm704, %v774, 0
    %943 = vmatpush.bf16.msra.mxu0 %v885
    %944 = vmatpush.bf16.msra.mxu0 %v883
    %945 = vmatpush.bf16.msra.mxu0 %v881
    %946 = vmatpush.bf16.msra.mxu0 %v879
    %947 = vmatpush.bf16.msra.mxu0 %v877
    %948 = vmatpush.bf16.msra.mxu0 %v875
    %949 = vmatpush.bf16.msra.mxu0 %v873
    %950 = vmatpush.bf16.msra.mxu0 %v871
    %951 = vmatmul.bf16.gmra.mxu0 %v759
    %v952 = vpop.f32.mrf.mxu0
    %v953 = vadd.f32 0.0, %v952
    %v954 = vpop.f32.mrf.mxu0
    %v955 = vadd.f32 0.0, %v954
    %956 = vmatmul.bf16.gmra.mxu0 %v761
    %v957 = vpop.f32.mrf.mxu0
    %v958 = vadd.f32 0.0, %v957
    %v959 = vpop.f32.mrf.mxu0
    %v960 = vadd.f32 0.0, %v959
    %961 = vmatmul.bf16.gmra.mxu0 %v763
    %v962 = vpop.f32.mrf.mxu0
    %v963 = vadd.f32 0.0, %v962
    %v964 = vpop.f32.mrf.mxu0
    %v965 = vadd.f32 0.0, %v964
    %966 = vmatmul.bf16.gmra.mxu0 %v765
    %v967 = vpop.f32.mrf.mxu0
    %v968 = vadd.f32 0.0, %v967
    %v969 = vpop.f32.mrf.mxu0
    %v970 = vadd.f32 0.0, %v969
    %971 = vmatmul.bf16.gmra.mxu0 %v767
    %v972 = vpop.f32.mrf.mxu0
    %v973 = vadd.f32 0.0, %v972
    %v974 = vpop.f32.mrf.mxu0
    %v975 = vadd.f32 0.0, %v974
    %976 = vmatmul.bf16.gmra.mxu0 %v769
    %v977 = vpop.f32.mrf.mxu0
    %v978 = vadd.f32 0.0, %v977
    %v979 = vpop.f32.mrf.mxu0
    %v980 = vadd.f32 0.0, %v979
    %981 = vmatmul.bf16.gmra.mxu0 %v771
    %v982 = vpop.f32.mrf.mxu0
    %v983 = vadd.f32 0.0, %v982
    %v984 = vpop.f32.mrf.mxu0
    %v985 = vadd.f32 0.0, %v984
    %986 = vmatmul.bf16.gmra.mxu0 %v773
    %v987 = vpop.f32.mrf.mxu0
    %v988 = vadd.f32 0.0, %v987
    %v989 = vpop.f32.mrf.mxu0
    %v990 = vadd.f32 0.0, %v989
    %991 = vdwg.mxu0
    %992 = vmatpush.bf16.msra.mxu0 0
    %993 = vmatpush.bf16.msra.mxu0 0
    %994 = vmatpush.bf16.msra.mxu0 0
    %995 = vmatpush.bf16.msra.mxu0 0
    %996 = vmatpush.bf16.msra.mxu0 %v893
    %997 = vmatpush.bf16.msra.mxu0 %v891
    %998 = vmatpush.bf16.msra.mxu0 %v889
    %999 = vmatpush.bf16.msra.mxu0 %v887
    %1000 = vmatmul.bf16.gmra.mxu0 %v920
    %v1001 = vpop.f32.mrf.mxu0
    %v1002 = vadd.f32 %v953, %v1001
    %v1003 = vpop.f32.mrf.mxu0
    %v1004 = vadd.f32 %v955, %v1003
    %1005 = vmatmul.bf16.gmra.mxu0 %v923
    %v1006 = vpop.f32.mrf.mxu0
    %v1007 = vadd.f32 %v958, %v1006
    %v1008 = vpop.f32.mrf.mxu0
    %v1009 = vadd.f32 %v960, %v1008
    %1010 = vmatmul.bf16.gmra.mxu0 %v926
    %v1011 = vpop.f32.mrf.mxu0
    %v1012 = vadd.f32 %v963, %v1011
    %v1013 = vpop.f32.mrf.mxu0
    %v1014 = vadd.f32 %v965, %v1013
    %1015 = vmatmul.bf16.gmra.mxu0 %v929
    %v1016 = vpop.f32.mrf.mxu0
    %v1017 = vadd.f32 %v968, %v1016
    %v1018 = vpop.f32.mrf.mxu0
    %v1019 = vadd.f32 %v970, %v1018
    %1020 = vmatmul.bf16.gmra.mxu0 %v932
    %v1021 = vpop.f32.mrf.mxu0
    %v1022 = vadd.f32 %v973, %v1021
    %v1023 = vpop.f32.mrf.mxu0
    %v1024 = vadd.f32 %v975, %v1023
    %1025 = vmatmul.bf16.gmra.mxu0 %v935
    %v1026 = vpop.f32.mrf.mxu0
    %v1027 = vadd.f32 %v978, %v1026
    %v1028 = vpop.f32.mrf.mxu0
    %v1029 = vadd.f32 %v980, %v1028
    %1030 = vmatmul.bf16.gmra.mxu0 %v938
    %v1031 = vpop.f32.mrf.mxu0
    %v1032 = vadd.f32 %v983, %v1031
    %v1033 = vpop.f32.mrf.mxu0
    %v1034 = vadd.f32 %v985, %v1033
    %1035 = vmatmul.bf16.gmra.mxu0 %v941
    %v1036 = vpop.f32.mrf.mxu0
    %v1037 = vadd.f32 %v988, %v1036
    %v1038 = vpop.f32.mrf.mxu0
    %v1039 = vadd.f32 %v990, %v1038
    %1040 = vdwg.mxu0
    %1041 = vmatpush.bf16.msra.mxu0 %v886
    %1042 = vmatpush.bf16.msra.mxu0 %v884
    %1043 = vmatpush.bf16.msra.mxu0 %v882
    %1044 = vmatpush.bf16.msra.mxu0 %v880
    %1045 = vmatpush.bf16.msra.mxu0 %v878
    %1046 = vmatpush.bf16.msra.mxu0 %v876
    %1047 = vmatpush.bf16.msra.mxu0 %v874
    %1048 = vmatpush.bf16.msra.mxu0 %v872
    %1049 = vmatmul.bf16.gmra.mxu0 %v759
    %v1050 = vpop.f32.mrf.mxu0
    %v1051 = vadd.f32 0.0, %v1050
    %v1052 = vpop.f32.mrf.mxu0
    %v1053 = vadd.f32 0.0, %v1052
    %1054 = vmatmul.bf16.gmra.mxu0 %v761
    %v1055 = vpop.f32.mrf.mxu0
    %v1056 = vadd.f32 0.0, %v1055
    %v1057 = vpop.f32.mrf.mxu0
    %v1058 = vadd.f32 0.0, %v1057
    %1059 = vmatmul.bf16.gmra.mxu0 %v763
    %v1060 = vpop.f32.mrf.mxu0
    %v1061 = vadd.f32 0.0, %v1060
    %v1062 = vpop.f32.mrf.mxu0
    %v1063 = vadd.f32 0.0, %v1062
    %1064 = vmatmul.bf16.gmra.mxu0 %v765
    %v1065 = vpop.f32.mrf.mxu0
    %v1066 = vadd.f32 0.0, %v1065
    %v1067 = vpop.f32.mrf.mxu0
    %v1068 = vadd.f32 0.0, %v1067
    %1069 = vmatmul.bf16.gmra.mxu0 %v767
    %v1070 = vpop.f32.mrf.mxu0
    %v1071 = vadd.f32 0.0, %v1070
    %v1072 = vpop.f32.mrf.mxu0
    %v1073 = vadd.f32 0.0, %v1072
    %1074 = vmatmul.bf16.gmra.mxu0 %v769
    %v1075 = vpop.f32.mrf.mxu0
    %v1076 = vadd.f32 0.0, %v1075
    %v1077 = vpop.f32.mrf.mxu0
    %v1078 = vadd.f32 0.0, %v1077
    %1079 = vmatmul.bf16.gmra.mxu0 %v771
    %v1080 = vpop.f32.mrf.mxu0
    %v1081 = vadd.f32 0.0, %v1080
    %v1082 = vpop.f32.mrf.mxu0
    %v1083 = vadd.f32 0.0, %v1082
    %1084 = vmatmul.bf16.gmra.mxu0 %v773
    %v1085 = vpop.f32.mrf.mxu0
    %v1086 = vadd.f32 0.0, %v1085
    %v1087 = vpop.f32.mrf.mxu0
    %v1088 = vadd.f32 0.0, %v1087
    %1089 = vdwg.mxu0
    %1090 = vmatpush.bf16.msra.mxu0 0
    %1091 = vmatpush.bf16.msra.mxu0 0
    %1092 = vmatpush.bf16.msra.mxu0 0
    %1093 = vmatpush.bf16.msra.mxu0 0
    %1094 = vmatpush.bf16.msra.mxu0 %v894
    %1095 = vmatpush.bf16.msra.mxu0 %v892
    %1096 = vmatpush.bf16.msra.mxu0 %v890
    %1097 = vmatpush.bf16.msra.mxu0 %v888
    %1098 = vmatmul.bf16.gmra.mxu0 %v920
    %v1099 = vpop.f32.mrf.mxu0
    %v1100 = vadd.f32 %v1051, %v1099
    %v1101 = vpop.f32.mrf.mxu0
    %v1102 = vadd.f32 %v1053, %v1101
    %1103 = vmatmul.bf16.gmra.mxu0 %v923
    %v1104 = vpop.f32.mrf.mxu0
    %v1105 = vadd.f32 %v1056, %v1104
    %v1106 = vpop.f32.mrf.mxu0
    %v1107 = vadd.f32 %v1058, %v1106
    %1108 = vmatmul.bf16.gmra.mxu0 %v926
    %v1109 = vpop.f32.mrf.mxu0
    %v1110 = vadd.f32 %v1061, %v1109
    %v1111 = vpop.f32.mrf.mxu0
    %v1112 = vadd.f32 %v1063, %v1111
    %1113 = vmatmul.bf16.gmra.mxu0 %v929
    %v1114 = vpop.f32.mrf.mxu0
    %v1115 = vadd.f32 %v1066, %v1114
    %v1116 = vpop.f32.mrf.mxu0
    %v1117 = vadd.f32 %v1068, %v1116
    %1118 = vmatmul.bf16.gmra.mxu0 %v932
    %v1119 = vpop.f32.mrf.mxu0
    %v1120 = vadd.f32 %v1071, %v1119
    %v1121 = vpop.f32.mrf.mxu0
    %v1122 = vadd.f32 %v1073, %v1121
    %1123 = vmatmul.bf16.gmra.mxu0 %v935
    %v1124 = vpop.f32.mrf.mxu0
    %v1125 = vadd.f32 %v1076, %v1124
    %v1126 = vpop.f32.mrf.mxu0
    %v1127 = vadd.f32 %v1078, %v1126
    %1128 = vmatmul.bf16.gmra.mxu0 %v938
    %v1129 = vpop.f32.mrf.mxu0
    %v1130 = vadd.f32 %v1081, %v1129
    %v1131 = vpop.f32.mrf.mxu0
    %v1132 = vadd.f32 %v1083, %v1131
    %1133 = vmatmul.bf16.gmra.mxu0 %v941
    %v1134 = vpop.f32.mrf.mxu0
    %v1135 = vadd.f32 %v1086, %v1134
    %v1136 = vpop.f32.mrf.mxu0
    %v1137 = vadd.f32 %v1088, %v1136
    %1138 = vdwg.mxu0
    %v1139 = vpack.c.bf16 %v1004, %v1002
    %v1140 = vpack.c.bf16 %v1102, %v1100
    %v1141 = vpack.c.bf16 %v1009, %v1007
    %v1142 = vpack.c.bf16 %v1107, %v1105
    %v1143 = vpack.c.bf16 %v1014, %v1012
    %v1144 = vpack.c.bf16 %v1112, %v1110
    %v1145 = vpack.c.bf16 %v1019, %v1017
    %v1146 = vpack.c.bf16 %v1117, %v1115
    %v1147 = vpack.c.bf16 %v1024, %v1022
    %v1148 = vpack.c.bf16 %v1122, %v1120
    %v1149 = vpack.c.bf16 %v1029, %v1027
    %v1150 = vpack.c.bf16 %v1127, %v1125
    %v1151 = vpack.c.bf16 %v1034, %v1032
    %v1152 = vpack.c.bf16 %v1132, %v1130
    %v1153 = vpack.c.bf16 %v1039, %v1037
    %v1154 = vpack.c.bf16 %v1137, %v1135
    %1171 = vrot.lane.b32.xlu0 %v1139, 64
    %v1172 = vpop.permute.xlu0 %1171
    %1173 = vrot.lane.b32.xlu0 %v1140, 64
    %v1174 = vpop.permute.xlu0 %1173
    %1175 = vrot.lane.b32.xlu0 %v1141, 64
    %v1176 = vpop.permute.xlu0 %1175
    %1177 = vrot.lane.b32.xlu0 %v1142, 64
    %v1178 = vpop.permute.xlu0 %1177
    %1179 = vrot.lane.b32.xlu0 %v1143, 64
    %v1180 = vpop.permute.xlu0 %1179
    %1181 = vrot.lane.b32.xlu0 %v1144, 64
    %v1182 = vpop.permute.xlu0 %1181
    %1183 = vrot.lane.b32.xlu0 %v1145, 64
    %v1184 = vpop.permute.xlu0 %1183
    %1185 = vrot.lane.b32.xlu0 %v1146, 64
    %v1186 = vpop.permute.xlu0 %1185
    %1187 = vrot.lane.b32.xlu0 %v1147, 64
    %v1188 = vpop.permute.xlu0 %1187
    %1189 = vrot.lane.b32.xlu0 %v1148, 64
    %v1190 = vpop.permute.xlu0 %1189
    %1191 = vrot.lane.b32.xlu0 %v1149, 64
    %v1192 = vpop.permute.xlu0 %1191
    %1193 = vrot.lane.b32.xlu0 %v1150, 64
    %v1194 = vpop.permute.xlu0 %1193
    %1195 = vrot.lane.b32.xlu0 %v1151, 64
    %v1196 = vpop.permute.xlu0 %1195
    %1197 = vrot.lane.b32.xlu0 %v1152, 64
    %v1198 = vpop.permute.xlu0 %1197
    %1199 = vrot.lane.b32.xlu0 %v1153, 64
    %v1200 = vpop.permute.xlu0 %1199
    %1201 = vrot.lane.b32.xlu0 %v1154, 64
    %v1202 = vpop.permute.xlu0 %1201
    %v1203 = vsel %vm485, %v1172, %v1174
    %v1204 = vsel %vm485, %v1176, %v1178
    %v1205 = vsel %vm485, %v1180, %v1182
    %v1206 = vsel %vm485, %v1184, %v1186
    %v1207 = vsel %vm485, %v1188, %v1190
    %v1208 = vsel %vm485, %v1192, %v1194
    %v1209 = vsel %vm485, %v1196, %v1198
    %v1210 = vsel %vm485, %v1200, %v1202
    %1219 = vmatpush.bf16.msra.mxu0 %v1210
    %1220 = vmatpush.bf16.msra.mxu0 %v1209
    %1221 = vmatpush.bf16.msra.mxu0 %v1208
    %1222 = vmatpush.bf16.msra.mxu0 %v1207
    %1223 = vmatpush.bf16.msra.mxu0 %v1206
    %1224 = vmatpush.bf16.msra.mxu0 %v1205
    %1225 = vmatpush.bf16.msra.mxu0 %v1204
    %1226 = vmatpush.bf16.msra.mxu0 %v1203
    %1227 = vmatmul.bf16.gmra.mxu0 %v421
    %v1228 = vpop.f32.mrf.mxu0
    %v1229 = vadd.f32 0.0, %v1228
    %v1230 = vpop.f32.mrf.mxu0
    %v1231 = vadd.f32 0.0, %v1230
    %1232 = vmatmul.bf16.gmra.mxu0 %v422
    %v1233 = vpop.f32.mrf.mxu0
    %v1234 = vadd.f32 0.0, %v1233
    %v1235 = vpop.f32.mrf.mxu0
    %v1236 = vadd.f32 0.0, %v1235
    %1237 = vmatmul.bf16.gmra.mxu0 %v423
    %v1238 = vpop.f32.mrf.mxu0
    %v1239 = vadd.f32 0.0, %v1238
    %v1240 = vpop.f32.mrf.mxu0
    %v1241 = vadd.f32 0.0, %v1240
    %1242 = vmatmul.bf16.gmra.mxu0 %v424
    %v1243 = vpop.f32.mrf.mxu0
    %v1244 = vadd.f32 0.0, %v1243
    %v1245 = vpop.f32.mrf.mxu0
    %v1246 = vadd.f32 0.0, %v1245
    %1247 = vmatmul.bf16.gmra.mxu0 %v425
    %v1248 = vpop.f32.mrf.mxu0
    %v1249 = vadd.f32 0.0, %v1248
    %v1250 = vpop.f32.mrf.mxu0
    %v1251 = vadd.f32 0.0, %v1250
    %1252 = vmatmul.bf16.gmra.mxu0 %v426
    %v1253 = vpop.f32.mrf.mxu0
    %v1254 = vadd.f32 0.0, %v1253
    %v1255 = vpop.f32.mrf.mxu0
    %v1256 = vadd.f32 0.0, %v1255
    %1257 = vmatmul.bf16.gmra.mxu0 %v427
    %v1258 = vpop.f32.mrf.mxu0
    %v1259 = vadd.f32 0.0, %v1258
    %v1260 = vpop.f32.mrf.mxu0
    %v1261 = vadd.f32 0.0, %v1260
    %1262 = vmatmul.bf16.gmra.mxu0 %v428
    %v1263 = vpop.f32.mrf.mxu0
    %v1264 = vadd.f32 0.0, %v1263
    %v1265 = vpop.f32.mrf.mxu0
    %v1266 = vadd.f32 0.0, %v1265
    %1267 = vdwg.mxu0
    %v1268 = vpack.c.bf16 %v1231, %v1229
    %v1269 = vpack.c.bf16 %v1236, %v1234
    %v1270 = vpack.c.bf16 %v1241, %v1239
    %v1271 = vpack.c.bf16 %v1246, %v1244
    %v1272 = vpack.c.bf16 %v1251, %v1249
    %v1273 = vpack.c.bf16 %v1256, %v1254
    %v1274 = vpack.c.bf16 %v1261, %v1259
    %v1275 = vpack.c.bf16 %v1266, %v1264
    %1284 = vrot.lane.b32.xlu0 %v1268, 64
    %v1285 = vpop.permute.xlu0 %1284
    %1286 = vrot.lane.b32.xlu0 %v1269, 64
    %v1287 = vpop.permute.xlu0 %1286
    %1288 = vrot.lane.b32.xlu0 %v1270, 64
    %v1289 = vpop.permute.xlu0 %1288
    %1290 = vrot.lane.b32.xlu0 %v1271, 64
    %v1291 = vpop.permute.xlu0 %1290
    %1292 = vrot.lane.b32.xlu0 %v1272, 64
    %v1293 = vpop.permute.xlu0 %1292
    %1294 = vrot.lane.b32.xlu0 %v1273, 64
    %v1295 = vpop.permute.xlu0 %1294
    %1296 = vrot.lane.b32.xlu0 %v1274, 64
    %v1297 = vpop.permute.xlu0 %1296
    %1298 = vrot.lane.b32.xlu0 %v1275, 64
    %v1299 = vpop.permute.xlu0 %1298
    %1308 = vmatpush.bf16.msra.mxu0 %v1299
    %1309 = vmatpush.bf16.msra.mxu0 %v1297
    %1310 = vmatpush.bf16.msra.mxu0 %v1295
    %1311 = vmatpush.bf16.msra.mxu0 %v1293
    %1312 = vmatpush.bf16.msra.mxu0 %v1291
    %1313 = vmatpush.bf16.msra.mxu0 %v1289
    %1314 = vmatpush.bf16.msra.mxu0 %v1287
    %1315 = vmatpush.bf16.msra.mxu0 %v1285
    %1316 = vmatmul.bf16.gmra.mxu0 %v421
    %v1317 = vpop.f32.mrf.mxu0
    %v1318 = vadd.f32 0.0, %v1317
    %v1319 = vpop.f32.mrf.mxu0
    %v1320 = vadd.f32 0.0, %v1319
    %1321 = vmatmul.bf16.gmra.mxu0 %v422
    %v1322 = vpop.f32.mrf.mxu0
    %v1323 = vadd.f32 0.0, %v1322
    %v1324 = vpop.f32.mrf.mxu0
    %v1325 = vadd.f32 0.0, %v1324
    %1326 = vmatmul.bf16.gmra.mxu0 %v423
    %v1327 = vpop.f32.mrf.mxu0
    %v1328 = vadd.f32 0.0, %v1327
    %v1329 = vpop.f32.mrf.mxu0
    %v1330 = vadd.f32 0.0, %v1329
    %1331 = vmatmul.bf16.gmra.mxu0 %v424
    %v1332 = vpop.f32.mrf.mxu0
    %v1333 = vadd.f32 0.0, %v1332
    %v1334 = vpop.f32.mrf.mxu0
    %v1335 = vadd.f32 0.0, %v1334
    %1336 = vmatmul.bf16.gmra.mxu0 %v425
    %v1337 = vpop.f32.mrf.mxu0
    %v1338 = vadd.f32 0.0, %v1337
    %v1339 = vpop.f32.mrf.mxu0
    %v1340 = vadd.f32 0.0, %v1339
    %1341 = vmatmul.bf16.gmra.mxu0 %v426
    %v1342 = vpop.f32.mrf.mxu0
    %v1343 = vadd.f32 0.0, %v1342
    %v1344 = vpop.f32.mrf.mxu0
    %v1345 = vadd.f32 0.0, %v1344
    %1346 = vmatmul.bf16.gmra.mxu0 %v427
    %v1347 = vpop.f32.mrf.mxu0
    %v1348 = vadd.f32 0.0, %v1347
    %v1349 = vpop.f32.mrf.mxu0
    %v1350 = vadd.f32 0.0, %v1349
    %1351 = vmatmul.bf16.gmra.mxu0 %v428
    %v1352 = vpop.f32.mrf.mxu0
    %v1353 = vadd.f32 0.0, %v1352
    %v1354 = vpop.f32.mrf.mxu0
    %v1355 = vadd.f32 0.0, %v1354
    %1356 = vdwg.mxu0
    %1373 = vrot.lane.b32.xlu0 %v1229, 64
    %v1374 = vpop.permute.xlu0 %1373
    %1375 = vrot.lane.b32.xlu0 %v1231, 64
    %v1376 = vpop.permute.xlu0 %1375
    %1377 = vrot.lane.b32.xlu0 %v1234, 64
    %v1378 = vpop.permute.xlu0 %1377
    %1379 = vrot.lane.b32.xlu0 %v1236, 64
    %v1380 = vpop.permute.xlu0 %1379
    %1381 = vrot.lane.b32.xlu0 %v1239, 64
    %v1382 = vpop.permute.xlu0 %1381
    %1383 = vrot.lane.b32.xlu0 %v1241, 64
    %v1384 = vpop.permute.xlu0 %1383
    %1385 = vrot.lane.b32.xlu0 %v1244, 64
    %v1386 = vpop.permute.xlu0 %1385
    %1387 = vrot.lane.b32.xlu0 %v1246, 64
    %v1388 = vpop.permute.xlu0 %1387
    %1389 = vrot.lane.b32.xlu0 %v1249, 64
    %v1390 = vpop.permute.xlu0 %1389
    %1391 = vrot.lane.b32.xlu0 %v1251, 64
    %v1392 = vpop.permute.xlu0 %1391
    %1393 = vrot.lane.b32.xlu0 %v1254, 64
    %v1394 = vpop.permute.xlu0 %1393
    %1395 = vrot.lane.b32.xlu0 %v1256, 64
    %v1396 = vpop.permute.xlu0 %1395
    %1397 = vrot.lane.b32.xlu0 %v1259, 64
    %v1398 = vpop.permute.xlu0 %1397
    %1399 = vrot.lane.b32.xlu0 %v1261, 64
    %v1400 = vpop.permute.xlu0 %1399
    %1401 = vrot.lane.b32.xlu0 %v1264, 64
    %v1402 = vpop.permute.xlu0 %1401
    %1403 = vrot.lane.b32.xlu0 %v1266, 64
    %v1404 = vpop.permute.xlu0 %1403
    %v1421 = vsel %vm704, %v1002, %v1374
    %v1422 = vsel %vm704, %v1004, %v1376
    %v1423 = vsel %vm704, %v1007, %v1378
    %v1424 = vsel %vm704, %v1009, %v1380
    %v1425 = vsel %vm704, %v1012, %v1382
    %v1426 = vsel %vm704, %v1014, %v1384
    %v1427 = vsel %vm704, %v1017, %v1386
    %v1428 = vsel %vm704, %v1019, %v1388
    %v1429 = vsel %vm704, %v1022, %v1390
    %v1430 = vsel %vm704, %v1024, %v1392
    %v1431 = vsel %vm704, %v1027, %v1394
    %v1432 = vsel %vm704, %v1029, %v1396
    %v1433 = vsel %vm704, %v1032, %v1398
    %v1434 = vsel %vm704, %v1034, %v1400
    %v1435 = vsel %vm704, %v1037, %v1402
    %v1436 = vsel %vm704, %v1039, %v1404
    %v1437 = vld [vmem:[%s5] sm:$0x3]
    %v1439 = vperm.slane %v1437, 0
    %v1440 = vperm.slane %v1437, 1
    %v1443 = vadd.f32 %v1421, %v1439
    %v1444 = vadd.f32 %v1318, %v1440
    %v1445 = vadd.f32 %v1422, %v1439
    %v1446 = vadd.f32 %v1320, %v1440
    %v1447 = vadd.f32 %v1423, %v1439
    %v1448 = vadd.f32 %v1323, %v1440
    %v1449 = vadd.f32 %v1424, %v1439
    %v1450 = vadd.f32 %v1325, %v1440
    %v1451 = vadd.f32 %v1425, %v1439
    %v1452 = vadd.f32 %v1328, %v1440
    %v1453 = vadd.f32 %v1426, %v1439
    %v1454 = vadd.f32 %v1330, %v1440
    %v1455 = vadd.f32 %v1427, %v1439
    %v1456 = vadd.f32 %v1333, %v1440
    %v1457 = vadd.f32 %v1428, %v1439
    %v1458 = vadd.f32 %v1335, %v1440
    %v1459 = vadd.f32 %v1429, %v1439
    %v1460 = vadd.f32 %v1338, %v1440
    %v1461 = vadd.f32 %v1430, %v1439
    %v1462 = vadd.f32 %v1340, %v1440
    %v1463 = vadd.f32 %v1431, %v1439
    %v1464 = vadd.f32 %v1343, %v1440
    %v1465 = vadd.f32 %v1432, %v1439
    %v1466 = vadd.f32 %v1345, %v1440
    %v1467 = vadd.f32 %v1433, %v1439
    %v1468 = vadd.f32 %v1348, %v1440
    %v1469 = vadd.f32 %v1434, %v1439
    %v1470 = vadd.f32 %v1350, %v1440
    %v1471 = vadd.f32 %v1435, %v1439
    %v1472 = vadd.f32 %v1353, %v1440
    %v1473 = vadd.f32 %v1436, %v1439
    %v1474 = vadd.f32 %v1355, %v1440
    %v1475 = vpack.c.bf16 %v1445, %v1443
    %v1476 = vpack.c.bf16 %v1446, %v1444
    %v1477 = vpack.c.bf16 %v1449, %v1447
    %v1478 = vpack.c.bf16 %v1450, %v1448
    %v1479 = vpack.c.bf16 %v1453, %v1451
    %v1480 = vpack.c.bf16 %v1454, %v1452
    %v1481 = vpack.c.bf16 %v1457, %v1455
    %v1482 = vpack.c.bf16 %v1458, %v1456
    %v1483 = vpack.c.bf16 %v1461, %v1459
    %v1484 = vpack.c.bf16 %v1462, %v1460
    %v1485 = vpack.c.bf16 %v1465, %v1463
    %v1486 = vpack.c.bf16 %v1466, %v1464
    %v1487 = vpack.c.bf16 %v1469, %v1467
    %v1488 = vpack.c.bf16 %v1470, %v1468
    %v1489 = vpack.c.bf16 %v1473, %v1471
    %v1490 = vpack.c.bf16 %v1474, %v1472
    %v1491 = vld [vmem:[#allocation6] sm:$0xff]
    %v1492 = vld [vmem:[#allocation6 + $0x8] sm:$0xff]
    %v1493 = vld [vmem:[#allocation6 + $0x10] sm:$0xff]
    %v1494 = vld [vmem:[#allocation6 + $0x18] sm:$0xff]
    %v1495 = vld [vmem:[#allocation6 + $0x20] sm:$0xff]
    %v1496 = vld [vmem:[#allocation6 + $0x28] sm:$0xff]
    %v1497 = vld [vmem:[#allocation6 + $0x30] sm:$0xff]
    %v1498 = vld [vmem:[#allocation6 + $0x38] sm:$0xff]
    %v1499 = vld [vmem:[#allocation6 + $0x40] sm:$0xff]
    %v1500 = vld [vmem:[#allocation6 + $0x48] sm:$0xff]
    %v1501 = vld [vmem:[#allocation6 + $0x50] sm:$0xff]
    %v1502 = vld [vmem:[#allocation6 + $0x58] sm:$0xff]
    %v1503 = vld [vmem:[#allocation6 + $0x60] sm:$0xff]
    %v1504 = vld [vmem:[#allocation6 + $0x68] sm:$0xff]
    %v1505 = vld [vmem:[#allocation6 + $0x70] sm:$0xff]
    %v1506 = vld [vmem:[#allocation6 + $0x78] sm:$0xff]
    %v1507 = vld [vmem:[#allocation6 + $0x80] sm:$0xff]
    %v1508 = vld [vmem:[#allocation6 + $0x88] sm:$0xff]
    %v1509 = vld [vmem:[#allocation6 + $0x90] sm:$0xff]
    %v1510 = vld [vmem:[#allocation6 + $0x98] sm:$0xff]
    %v1511 = vld [vmem:[#allocation6 + $0xa0] sm:$0xff]
    %v1512 = vld [vmem:[#allocation6 + $0xa8] sm:$0xff]
    %v1513 = vld [vmem:[#allocation6 + $0xb0] sm:$0xff]
    %v1514 = vld [vmem:[#allocation6 + $0xb8] sm:$0xff]
    %v1539 = vunpack.c.l.b16 %v1491
    %v1540 = vunpack.c.h.b16 %v1491
    %v1541 = vunpack.c.l.b16 %v1492
    %v1542 = vunpack.c.h.b16 %v1492
    %v1543 = vunpack.c.l.b16 %v1493
    %v1544 = vunpack.c.h.b16 %v1493
    %v1545 = vunpack.c.l.b16 %v1494
    %v1546 = vunpack.c.h.b16 %v1494
    %v1547 = vunpack.c.l.b16 %v1495
    %v1548 = vunpack.c.h.b16 %v1495
    %v1549 = vunpack.c.l.b16 %v1496
    %v1550 = vunpack.c.h.b16 %v1496
    %v1551 = vunpack.c.l.b16 %v1497
    %v1552 = vunpack.c.h.b16 %v1497
    %v1553 = vunpack.c.l.b16 %v1498
    %v1554 = vunpack.c.h.b16 %v1498
    %v1555 = vunpack.c.l.b16 %v1499
    %v1556 = vunpack.c.h.b16 %v1499
    %v1557 = vunpack.c.l.b16 %v1500
    %v1558 = vunpack.c.h.b16 %v1500
    %v1559 = vunpack.c.l.b16 %v1501
    %v1560 = vunpack.c.h.b16 %v1501
    %v1561 = vunpack.c.l.b16 %v1502
    %v1562 = vunpack.c.h.b16 %v1502
    %v1563 = vunpack.c.l.b16 %v1503
    %v1564 = vunpack.c.h.b16 %v1503
    %v1565 = vunpack.c.l.b16 %v1504
    %v1566 = vunpack.c.h.b16 %v1504
    %v1567 = vunpack.c.l.b16 %v1505
    %v1568 = vunpack.c.h.b16 %v1505
    %v1569 = vunpack.c.l.b16 %v1506
    %v1570 = vunpack.c.h.b16 %v1506
    %v1571 = vunpack.c.l.b16 %v1507
    %v1572 = vunpack.c.h.b16 %v1507
    %v1573 = vunpack.c.l.b16 %v1508
    %v1574 = vunpack.c.h.b16 %v1508
    %v1575 = vunpack.c.l.b16 %v1509
    %v1576 = vunpack.c.h.b16 %v1509
    %v1577 = vunpack.c.l.b16 %v1510
    %v1578 = vunpack.c.h.b16 %v1510
    %v1579 = vunpack.c.l.b16 %v1511
    %v1580 = vunpack.c.h.b16 %v1511
    %v1581 = vunpack.c.l.b16 %v1512
    %v1582 = vunpack.c.h.b16 %v1512
    %v1583 = vunpack.c.l.b16 %v1513
    %v1584 = vunpack.c.h.b16 %v1513
    %v1585 = vunpack.c.l.b16 %v1514
    %v1586 = vunpack.c.h.b16 %v1514
    %v1587 = vpack.c.b16 %v1541, %v1539
    %v1588 = vpack.c.b16 %v1542, %v1540
    %v1589 = vpack.c.b16 %v1545, %v1543
    %v1590 = vpack.c.b16 %v1546, %v1544
    %v1591 = vpack.c.b16 %v1549, %v1547
    %v1592 = vpack.c.b16 %v1550, %v1548
    %v1593 = vpack.c.b16 %v1553, %v1551
    %v1594 = vpack.c.b16 %v1554, %v1552
    %v1595 = vpack.c.b16 %v1557, %v1555
    %v1596 = vpack.c.b16 %v1558, %v1556
    %v1597 = vpack.c.b16 %v1561, %v1559
    %v1598 = vpack.c.b16 %v1562, %v1560
    %v1599 = vpack.c.b16 %v1565, %v1563
    %v1600 = vpack.c.b16 %v1566, %v1564
    %v1601 = vpack.c.b16 %v1569, %v1567
    %v1602 = vpack.c.b16 %v1570, %v1568
    %v1603 = vpack.c.b16 %v1573, %v1571
    %v1604 = vpack.c.b16 %v1574, %v1572
    %v1605 = vpack.c.b16 %v1577, %v1575
    %v1606 = vpack.c.b16 %v1578, %v1576
    %v1607 = vpack.c.b16 %v1581, %v1579
    %v1608 = vpack.c.b16 %v1582, %v1580
    %v1609 = vpack.c.b16 %v1585, %v1583
    %v1610 = vpack.c.b16 %v1586, %v1584
    %v1636 = vsel %vm704, %v1476, 0
    %v1639 = vsel %vm704, %v1478, 0
    %v1642 = vsel %vm704, %v1480, 0
    %v1645 = vsel %vm704, %v1482, 0
    %v1648 = vsel %vm704, %v1484, 0
    %v1651 = vsel %vm704, %v1486, 0
    %v1654 = vsel %vm704, %v1488, 0
    %v1657 = vsel %vm704, %v1490, 0
    %1659 = vmatpush.bf16.msra.mxu0 %v1601
    %1660 = vmatpush.bf16.msra.mxu0 %v1599
    %1661 = vmatpush.bf16.msra.mxu0 %v1597
    %1662 = vmatpush.bf16.msra.mxu0 %v1595
    %1663 = vmatpush.bf16.msra.mxu0 %v1593
    %1664 = vmatpush.bf16.msra.mxu0 %v1591
    %1665 = vmatpush.bf16.msra.mxu0 %v1589
    %1666 = vmatpush.bf16.msra.mxu0 %v1587
    %1667 = vmatmul.bf16.gmra.mxu0 %v1475
    %v1668 = vpop.f32.mrf.mxu0
    %v1669 = vadd.f32 0.0, %v1668
    %v1670 = vpop.f32.mrf.mxu0
    %v1671 = vadd.f32 0.0, %v1670
    %1672 = vmatmul.bf16.gmra.mxu0 %v1477
    %v1673 = vpop.f32.mrf.mxu0
    %v1674 = vadd.f32 0.0, %v1673
    %v1675 = vpop.f32.mrf.mxu0
    %v1676 = vadd.f32 0.0, %v1675
    %1677 = vmatmul.bf16.gmra.mxu0 %v1479
    %v1678 = vpop.f32.mrf.mxu0
    %v1679 = vadd.f32 0.0, %v1678
    %v1680 = vpop.f32.mrf.mxu0
    %v1681 = vadd.f32 0.0, %v1680
    %1682 = vmatmul.bf16.gmra.mxu0 %v1481
    %v1683 = vpop.f32.mrf.mxu0
    %v1684 = vadd.f32 0.0, %v1683
    %v1685 = vpop.f32.mrf.mxu0
    %v1686 = vadd.f32 0.0, %v1685
    %1687 = vmatmul.bf16.gmra.mxu0 %v1483
    %v1688 = vpop.f32.mrf.mxu0
    %v1689 = vadd.f32 0.0, %v1688
    %v1690 = vpop.f32.mrf.mxu0
    %v1691 = vadd.f32 0.0, %v1690
    %1692 = vmatmul.bf16.gmra.mxu0 %v1485
    %v1693 = vpop.f32.mrf.mxu0
    %v1694 = vadd.f32 0.0, %v1693
    %v1695 = vpop.f32.mrf.mxu0
    %v1696 = vadd.f32 0.0, %v1695
    %1697 = vmatmul.bf16.gmra.mxu0 %v1487
    %v1698 = vpop.f32.mrf.mxu0
    %v1699 = vadd.f32 0.0, %v1698
    %v1700 = vpop.f32.mrf.mxu0
    %v1701 = vadd.f32 0.0, %v1700
    %1702 = vmatmul.bf16.gmra.mxu0 %v1489
    %v1703 = vpop.f32.mrf.mxu0
    %v1704 = vadd.f32 0.0, %v1703
    %v1705 = vpop.f32.mrf.mxu0
    %v1706 = vadd.f32 0.0, %v1705
    %1707 = vdwg.mxu0
    %1708 = vmatpush.bf16.msra.mxu0 0
    %1709 = vmatpush.bf16.msra.mxu0 0
    %1710 = vmatpush.bf16.msra.mxu0 0
    %1711 = vmatpush.bf16.msra.mxu0 0
    %1712 = vmatpush.bf16.msra.mxu0 %v1609
    %1713 = vmatpush.bf16.msra.mxu0 %v1607
    %1714 = vmatpush.bf16.msra.mxu0 %v1605
    %1715 = vmatpush.bf16.msra.mxu0 %v1603
    %1716 = vmatmul.bf16.gmra.mxu0 %v1636
    %v1717 = vpop.f32.mrf.mxu0
    %v1718 = vadd.f32 %v1669, %v1717
    %v1719 = vpop.f32.mrf.mxu0
    %v1720 = vadd.f32 %v1671, %v1719
    %1721 = vmatmul.bf16.gmra.mxu0 %v1639
    %v1722 = vpop.f32.mrf.mxu0
    %v1723 = vadd.f32 %v1674, %v1722
    %v1724 = vpop.f32.mrf.mxu0
    %v1725 = vadd.f32 %v1676, %v1724
    %1726 = vmatmul.bf16.gmra.mxu0 %v1642
    %v1727 = vpop.f32.mrf.mxu0
    %v1728 = vadd.f32 %v1679, %v1727
    %v1729 = vpop.f32.mrf.mxu0
    %v1730 = vadd.f32 %v1681, %v1729
    %1731 = vmatmul.bf16.gmra.mxu0 %v1645
    %v1732 = vpop.f32.mrf.mxu0
    %v1733 = vadd.f32 %v1684, %v1732
    %v1734 = vpop.f32.mrf.mxu0
    %v1735 = vadd.f32 %v1686, %v1734
    %1736 = vmatmul.bf16.gmra.mxu0 %v1648
    %v1737 = vpop.f32.mrf.mxu0
    %v1738 = vadd.f32 %v1689, %v1737
    %v1739 = vpop.f32.mrf.mxu0
    %v1740 = vadd.f32 %v1691, %v1739
    %1741 = vmatmul.bf16.gmra.mxu0 %v1651
    %v1742 = vpop.f32.mrf.mxu0
    %v1743 = vadd.f32 %v1694, %v1742
    %v1744 = vpop.f32.mrf.mxu0
    %v1745 = vadd.f32 %v1696, %v1744
    %1746 = vmatmul.bf16.gmra.mxu0 %v1654
    %v1747 = vpop.f32.mrf.mxu0
    %v1748 = vadd.f32 %v1699, %v1747
    %v1749 = vpop.f32.mrf.mxu0
    %v1750 = vadd.f32 %v1701, %v1749
    %1751 = vmatmul.bf16.gmra.mxu0 %v1657
    %v1752 = vpop.f32.mrf.mxu0
    %v1753 = vadd.f32 %v1704, %v1752
    %v1754 = vpop.f32.mrf.mxu0
    %v1755 = vadd.f32 %v1706, %v1754
    %1756 = vdwg.mxu0
    %1757 = vmatpush.bf16.msra.mxu0 %v1602
    %1758 = vmatpush.bf16.msra.mxu0 %v1600
    %1759 = vmatpush.bf16.msra.mxu0 %v1598
    %1760 = vmatpush.bf16.msra.mxu0 %v1596
    %1761 = vmatpush.bf16.msra.mxu0 %v1594
    %1762 = vmatpush.bf16.msra.mxu0 %v1592
    %1763 = vmatpush.bf16.msra.mxu0 %v1590
    %1764 = vmatpush.bf16.msra.mxu0 %v1588
    %1765 = vmatmul.bf16.gmra.mxu0 %v1475
    %v1766 = vpop.f32.mrf.mxu0
    %v1767 = vadd.f32 0.0, %v1766
    %v1768 = vpop.f32.mrf.mxu0
    %v1769 = vadd.f32 0.0, %v1768
    %1770 = vmatmul.bf16.gmra.mxu0 %v1477
    %v1771 = vpop.f32.mrf.mxu0
    %v1772 = vadd.f32 0.0, %v1771
    %v1773 = vpop.f32.mrf.mxu0
    %v1774 = vadd.f32 0.0, %v1773
    %1775 = vmatmul.bf16.gmra.mxu0 %v1479
    %v1776 = vpop.f32.mrf.mxu0
    %v1777 = vadd.f32 0.0, %v1776
    %v1778 = vpop.f32.mrf.mxu0
    %v1779 = vadd.f32 0.0, %v1778
    %1780 = vmatmul.bf16.gmra.mxu0 %v1481
    %v1781 = vpop.f32.mrf.mxu0
    %v1782 = vadd.f32 0.0, %v1781
    %v1783 = vpop.f32.mrf.mxu0
    %v1784 = vadd.f32 0.0, %v1783
    %1785 = vmatmul.bf16.gmra.mxu0 %v1483
    %v1786 = vpop.f32.mrf.mxu0
    %v1787 = vadd.f32 0.0, %v1786
    %v1788 = vpop.f32.mrf.mxu0
    %v1789 = vadd.f32 0.0, %v1788
    %1790 = vmatmul.bf16.gmra.mxu0 %v1485
    %v1791 = vpop.f32.mrf.mxu0
    %v1792 = vadd.f32 0.0, %v1791
    %v1793 = vpop.f32.mrf.mxu0
    %v1794 = vadd.f32 0.0, %v1793
    %1795 = vmatmul.bf16.gmra.mxu0 %v1487
    %v1796 = vpop.f32.mrf.mxu0
    %v1797 = vadd.f32 0.0, %v1796
    %v1798 = vpop.f32.mrf.mxu0
    %v1799 = vadd.f32 0.0, %v1798
    %1800 = vmatmul.bf16.gmra.mxu0 %v1489
    %v1801 = vpop.f32.mrf.mxu0
    %v1802 = vadd.f32 0.0, %v1801
    %v1803 = vpop.f32.mrf.mxu0
    %v1804 = vadd.f32 0.0, %v1803
    %1805 = vdwg.mxu0
    %1806 = vmatpush.bf16.msra.mxu0 0
    %1807 = vmatpush.bf16.msra.mxu0 0
    %1808 = vmatpush.bf16.msra.mxu0 0
    %1809 = vmatpush.bf16.msra.mxu0 0
    %1810 = vmatpush.bf16.msra.mxu0 %v1610
    %1811 = vmatpush.bf16.msra.mxu0 %v1608
    %1812 = vmatpush.bf16.msra.mxu0 %v1606
    %1813 = vmatpush.bf16.msra.mxu0 %v1604
    %1814 = vmatmul.bf16.gmra.mxu0 %v1636
    %v1815 = vpop.f32.mrf.mxu0
    %v1816 = vadd.f32 %v1767, %v1815
    %v1817 = vpop.f32.mrf.mxu0
    %v1818 = vadd.f32 %v1769, %v1817
    %1819 = vmatmul.bf16.gmra.mxu0 %v1639
    %v1820 = vpop.f32.mrf.mxu0
    %v1821 = vadd.f32 %v1772, %v1820
    %v1822 = vpop.f32.mrf.mxu0
    %v1823 = vadd.f32 %v1774, %v1822
    %1824 = vmatmul.bf16.gmra.mxu0 %v1642
    %v1825 = vpop.f32.mrf.mxu0
    %v1826 = vadd.f32 %v1777, %v1825
    %v1827 = vpop.f32.mrf.mxu0
    %v1828 = vadd.f32 %v1779, %v1827
    %1829 = vmatmul.bf16.gmra.mxu0 %v1645
    %v1830 = vpop.f32.mrf.mxu0
    %v1831 = vadd.f32 %v1782, %v1830
    %v1832 = vpop.f32.mrf.mxu0
    %v1833 = vadd.f32 %v1784, %v1832
    %1834 = vmatmul.bf16.gmra.mxu0 %v1648
    %v1835 = vpop.f32.mrf.mxu0
    %v1836 = vadd.f32 %v1787, %v1835
    %v1837 = vpop.f32.mrf.mxu0
    %v1838 = vadd.f32 %v1789, %v1837
    %1839 = vmatmul.bf16.gmra.mxu0 %v1651
    %v1840 = vpop.f32.mrf.mxu0
    %v1841 = vadd.f32 %v1792, %v1840
    %v1842 = vpop.f32.mrf.mxu0
    %v1843 = vadd.f32 %v1794, %v1842
    %1844 = vmatmul.bf16.gmra.mxu0 %v1654
    %v1845 = vpop.f32.mrf.mxu0
    %v1846 = vadd.f32 %v1797, %v1845
    %v1847 = vpop.f32.mrf.mxu0
    %v1848 = vadd.f32 %v1799, %v1847
    %1849 = vmatmul.bf16.gmra.mxu0 %v1657
    %v1850 = vpop.f32.mrf.mxu0
    %v1851 = vadd.f32 %v1802, %v1850
    %v1852 = vpop.f32.mrf.mxu0
    %v1853 = vadd.f32 %v1804, %v1852
    %1854 = vdwg.mxu0
    %v1855 = vpack.c.bf16 %v1720, %v1718
    %v1856 = vpack.c.bf16 %v1818, %v1816
    %v1857 = vpack.c.bf16 %v1725, %v1723
    %v1858 = vpack.c.bf16 %v1823, %v1821
    %v1859 = vpack.c.bf16 %v1730, %v1728
    %v1860 = vpack.c.bf16 %v1828, %v1826
    %v1861 = vpack.c.bf16 %v1735, %v1733
    %v1862 = vpack.c.bf16 %v1833, %v1831
    %v1863 = vpack.c.bf16 %v1740, %v1738
    %v1864 = vpack.c.bf16 %v1838, %v1836
    %v1865 = vpack.c.bf16 %v1745, %v1743
    %v1866 = vpack.c.bf16 %v1843, %v1841
    %v1867 = vpack.c.bf16 %v1750, %v1748
    %v1868 = vpack.c.bf16 %v1848, %v1846
    %v1869 = vpack.c.bf16 %v1755, %v1753
    %v1870 = vpack.c.bf16 %v1853, %v1851
    %1887 = vrot.lane.b32.xlu0 %v1855, 64
    %v1888 = vpop.permute.xlu0 %1887
    %1889 = vrot.lane.b32.xlu0 %v1856, 64
    %v1890 = vpop.permute.xlu0 %1889
    %1891 = vrot.lane.b32.xlu0 %v1857, 64
    %v1892 = vpop.permute.xlu0 %1891
    %1893 = vrot.lane.b32.xlu0 %v1858, 64
    %v1894 = vpop.permute.xlu0 %1893
    %1895 = vrot.lane.b32.xlu0 %v1859, 64
    %v1896 = vpop.permute.xlu0 %1895
    %1897 = vrot.lane.b32.xlu0 %v1860, 64
    %v1898 = vpop.permute.xlu0 %1897
    %1899 = vrot.lane.b32.xlu0 %v1861, 64
    %v1900 = vpop.permute.xlu0 %1899
    %1901 = vrot.lane.b32.xlu0 %v1862, 64
    %v1902 = vpop.permute.xlu0 %1901
    %1903 = vrot.lane.b32.xlu0 %v1863, 64
    %v1904 = vpop.permute.xlu0 %1903
    %1905 = vrot.lane.b32.xlu0 %v1864, 64
    %v1906 = vpop.permute.xlu0 %1905
    %1907 = vrot.lane.b32.xlu0 %v1865, 64
    %v1908 = vpop.permute.xlu0 %1907
    %1909 = vrot.lane.b32.xlu0 %v1866, 64
    %v1910 = vpop.permute.xlu0 %1909
    %1911 = vrot.lane.b32.xlu0 %v1867, 64
    %v1912 = vpop.permute.xlu0 %1911
    %1913 = vrot.lane.b32.xlu0 %v1868, 64
    %v1914 = vpop.permute.xlu0 %1913
    %1915 = vrot.lane.b32.xlu0 %v1869, 64
    %v1916 = vpop.permute.xlu0 %1915
    %1917 = vrot.lane.b32.xlu0 %v1870, 64
    %v1918 = vpop.permute.xlu0 %1917
    %v1919 = vsel %vm485, %v1888, %v1890
    %v1920 = vsel %vm485, %v1892, %v1894
    %v1921 = vsel %vm485, %v1896, %v1898
    %v1922 = vsel %vm485, %v1900, %v1902
    %v1923 = vsel %vm485, %v1904, %v1906
    %v1924 = vsel %vm485, %v1908, %v1910
    %v1925 = vsel %vm485, %v1912, %v1914
    %v1926 = vsel %vm485, %v1916, %v1918
    %1935 = vmatpush.bf16.msra.mxu0 %v1926
    %1936 = vmatpush.bf16.msra.mxu0 %v1925
    %1937 = vmatpush.bf16.msra.mxu0 %v1924
    %1938 = vmatpush.bf16.msra.mxu0 %v1923
    %1939 = vmatpush.bf16.msra.mxu0 %v1922
    %1940 = vmatpush.bf16.msra.mxu0 %v1921
    %1941 = vmatpush.bf16.msra.mxu0 %v1920
    %1942 = vmatpush.bf16.msra.mxu0 %v1919
    %1943 = vmatmul.bf16.gmra.mxu0 %v421
    %v1944 = vpop.f32.mrf.mxu0
    %v1945 = vadd.f32 0.0, %v1944
    %v1946 = vpop.f32.mrf.mxu0
    %v1947 = vadd.f32 0.0, %v1946
    %1948 = vmatmul.bf16.gmra.mxu0 %v422
    %v1949 = vpop.f32.mrf.mxu0
    %v1950 = vadd.f32 0.0, %v1949
    %v1951 = vpop.f32.mrf.mxu0
    %v1952 = vadd.f32 0.0, %v1951
    %1953 = vmatmul.bf16.gmra.mxu0 %v423
    %v1954 = vpop.f32.mrf.mxu0
    %v1955 = vadd.f32 0.0, %v1954
    %v1956 = vpop.f32.mrf.mxu0
    %v1957 = vadd.f32 0.0, %v1956
    %1958 = vmatmul.bf16.gmra.mxu0 %v424
    %v1959 = vpop.f32.mrf.mxu0
    %v1960 = vadd.f32 0.0, %v1959
    %v1961 = vpop.f32.mrf.mxu0
    %v1962 = vadd.f32 0.0, %v1961
    %1963 = vmatmul.bf16.gmra.mxu0 %v425
    %v1964 = vpop.f32.mrf.mxu0
    %v1965 = vadd.f32 0.0, %v1964
    %v1966 = vpop.f32.mrf.mxu0
    %v1967 = vadd.f32 0.0, %v1966
    %1968 = vmatmul.bf16.gmra.mxu0 %v426
    %v1969 = vpop.f32.mrf.mxu0
    %v1970 = vadd.f32 0.0, %v1969
    %v1971 = vpop.f32.mrf.mxu0
    %v1972 = vadd.f32 0.0, %v1971
    %1973 = vmatmul.bf16.gmra.mxu0 %v427
    %v1974 = vpop.f32.mrf.mxu0
    %v1975 = vadd.f32 0.0, %v1974
    %v1976 = vpop.f32.mrf.mxu0
    %v1977 = vadd.f32 0.0, %v1976
    %1978 = vmatmul.bf16.gmra.mxu0 %v428
    %v1979 = vpop.f32.mrf.mxu0
    %v1980 = vadd.f32 0.0, %v1979
    %v1981 = vpop.f32.mrf.mxu0
    %v1982 = vadd.f32 0.0, %v1981
    %1983 = vdwg.mxu0
    %v1984 = vpack.c.bf16 %v1947, %v1945
    %v1985 = vpack.c.bf16 %v1952, %v1950
    %v1986 = vpack.c.bf16 %v1957, %v1955
    %v1987 = vpack.c.bf16 %v1962, %v1960
    %v1988 = vpack.c.bf16 %v1967, %v1965
    %v1989 = vpack.c.bf16 %v1972, %v1970
    %v1990 = vpack.c.bf16 %v1977, %v1975
    %v1991 = vpack.c.bf16 %v1982, %v1980
    %2000 = vrot.lane.b32.xlu0 %v1984, 64
    %v2001 = vpop.permute.xlu0 %2000
    %2002 = vrot.lane.b32.xlu0 %v1985, 64
    %v2003 = vpop.permute.xlu0 %2002
    %2004 = vrot.lane.b32.xlu0 %v1986, 64
    %v2005 = vpop.permute.xlu0 %2004
    %2006 = vrot.lane.b32.xlu0 %v1987, 64
    %v2007 = vpop.permute.xlu0 %2006
    %2008 = vrot.lane.b32.xlu0 %v1988, 64
    %v2009 = vpop.permute.xlu0 %2008
    %2010 = vrot.lane.b32.xlu0 %v1989, 64
    %v2011 = vpop.permute.xlu0 %2010
    %2012 = vrot.lane.b32.xlu0 %v1990, 64
    %v2013 = vpop.permute.xlu0 %2012
    %2014 = vrot.lane.b32.xlu0 %v1991, 64
    %v2015 = vpop.permute.xlu0 %2014
    %2024 = vmatpush.bf16.msra.mxu0 %v2015
    %2025 = vmatpush.bf16.msra.mxu0 %v2013
    %2026 = vmatpush.bf16.msra.mxu0 %v2011
    %2027 = vmatpush.bf16.msra.mxu0 %v2009
    %2028 = vmatpush.bf16.msra.mxu0 %v2007
    %2029 = vmatpush.bf16.msra.mxu0 %v2005
    %2030 = vmatpush.bf16.msra.mxu0 %v2003
    %2031 = vmatpush.bf16.msra.mxu0 %v2001
    %2032 = vmatmul.bf16.gmra.mxu0 %v421
    %v2033 = vpop.f32.mrf.mxu0
    %v2034 = vadd.f32 0.0, %v2033
    %v2035 = vpop.f32.mrf.mxu0
    %v2036 = vadd.f32 0.0, %v2035
    %2037 = vmatmul.bf16.gmra.mxu0 %v422
    %v2038 = vpop.f32.mrf.mxu0
    %v2039 = vadd.f32 0.0, %v2038
    %v2040 = vpop.f32.mrf.mxu0
    %v2041 = vadd.f32 0.0, %v2040
    %2042 = vmatmul.bf16.gmra.mxu0 %v423
    %v2043 = vpop.f32.mrf.mxu0
    %v2044 = vadd.f32 0.0, %v2043
    %v2045 = vpop.f32.mrf.mxu0
    %v2046 = vadd.f32 0.0, %v2045
    %2047 = vmatmul.bf16.gmra.mxu0 %v424
    %v2048 = vpop.f32.mrf.mxu0
    %v2049 = vadd.f32 0.0, %v2048
    %v2050 = vpop.f32.mrf.mxu0
    %v2051 = vadd.f32 0.0, %v2050
    %2052 = vmatmul.bf16.gmra.mxu0 %v425
    %v2053 = vpop.f32.mrf.mxu0
    %v2054 = vadd.f32 0.0, %v2053
    %v2055 = vpop.f32.mrf.mxu0
    %v2056 = vadd.f32 0.0, %v2055
    %2057 = vmatmul.bf16.gmra.mxu0 %v426
    %v2058 = vpop.f32.mrf.mxu0
    %v2059 = vadd.f32 0.0, %v2058
    %v2060 = vpop.f32.mrf.mxu0
    %v2061 = vadd.f32 0.0, %v2060
    %2062 = vmatmul.bf16.gmra.mxu0 %v427
    %v2063 = vpop.f32.mrf.mxu0
    %v2064 = vadd.f32 0.0, %v2063
    %v2065 = vpop.f32.mrf.mxu0
    %v2066 = vadd.f32 0.0, %v2065
    %2067 = vmatmul.bf16.gmra.mxu0 %v428
    %v2068 = vpop.f32.mrf.mxu0
    %v2069 = vadd.f32 0.0, %v2068
    %v2070 = vpop.f32.mrf.mxu0
    %v2071 = vadd.f32 0.0, %v2070
    %2072 = vdwg.mxu0
    %2089 = vrot.lane.b32.xlu0 %v1945, 64
    %v2090 = vpop.permute.xlu0 %2089
    %2091 = vrot.lane.b32.xlu0 %v1947, 64
    %v2092 = vpop.permute.xlu0 %2091
    %2093 = vrot.lane.b32.xlu0 %v1950, 64
    %v2094 = vpop.permute.xlu0 %2093
    %2095 = vrot.lane.b32.xlu0 %v1952, 64
    %v2096 = vpop.permute.xlu0 %2095
    %2097 = vrot.lane.b32.xlu0 %v1955, 64
    %v2098 = vpop.permute.xlu0 %2097
    %2099 = vrot.lane.b32.xlu0 %v1957, 64
    %v2100 = vpop.permute.xlu0 %2099
    %2101 = vrot.lane.b32.xlu0 %v1960, 64
    %v2102 = vpop.permute.xlu0 %2101
    %2103 = vrot.lane.b32.xlu0 %v1962, 64
    %v2104 = vpop.permute.xlu0 %2103
    %2105 = vrot.lane.b32.xlu0 %v1965, 64
    %v2106 = vpop.permute.xlu0 %2105
    %2107 = vrot.lane.b32.xlu0 %v1967, 64
    %v2108 = vpop.permute.xlu0 %2107
    %2109 = vrot.lane.b32.xlu0 %v1970, 64
    %v2110 = vpop.permute.xlu0 %2109
    %2111 = vrot.lane.b32.xlu0 %v1972, 64
    %v2112 = vpop.permute.xlu0 %2111
    %2113 = vrot.lane.b32.xlu0 %v1975, 64
    %v2114 = vpop.permute.xlu0 %2113
    %2115 = vrot.lane.b32.xlu0 %v1977, 64
    %v2116 = vpop.permute.xlu0 %2115
    %2117 = vrot.lane.b32.xlu0 %v1980, 64
    %v2118 = vpop.permute.xlu0 %2117
    %2119 = vrot.lane.b32.xlu0 %v1982, 64
    %v2120 = vpop.permute.xlu0 %2119
    %v2137 = vsel %vm704, %v1718, %v2090
    %v2138 = vsel %vm704, %v1720, %v2092
    %v2139 = vsel %vm704, %v1723, %v2094
    %v2140 = vsel %vm704, %v1725, %v2096
    %v2141 = vsel %vm704, %v1728, %v2098
    %v2142 = vsel %vm704, %v1730, %v2100
    %v2143 = vsel %vm704, %v1733, %v2102
    %v2144 = vsel %vm704, %v1735, %v2104
    %v2145 = vsel %vm704, %v1738, %v2106
    %v2146 = vsel %vm704, %v1740, %v2108
    %v2147 = vsel %vm704, %v1743, %v2110
    %v2148 = vsel %vm704, %v1745, %v2112
    %v2149 = vsel %vm704, %v1748, %v2114
    %v2150 = vsel %vm704, %v1750, %v2116
    %v2151 = vsel %vm704, %v1753, %v2118
    %v2152 = vsel %vm704, %v1755, %v2120
    %v2153 = vld [vmem:[%s7] sm:$0x3]
    %v2155 = vperm.slane %v2153, 0
    %v2156 = vperm.slane %v2153, 1
    %v2159 = vadd.f32 %v2137, %v2155
    %v2160 = vadd.f32 %v2034, %v2156
    %v2161 = vadd.f32 %v2138, %v2155
    %v2162 = vadd.f32 %v2036, %v2156
    %v2163 = vadd.f32 %v2139, %v2155
    %v2164 = vadd.f32 %v2039, %v2156
    %v2165 = vadd.f32 %v2140, %v2155
    %v2166 = vadd.f32 %v2041, %v2156
    %v2167 = vadd.f32 %v2141, %v2155
    %v2168 = vadd.f32 %v2044, %v2156
    %v2169 = vadd.f32 %v2142, %v2155
    %v2170 = vadd.f32 %v2046, %v2156
    %v2171 = vadd.f32 %v2143, %v2155
    %v2172 = vadd.f32 %v2049, %v2156
    %v2173 = vadd.f32 %v2144, %v2155
    %v2174 = vadd.f32 %v2051, %v2156
    %v2175 = vadd.f32 %v2145, %v2155
    %v2176 = vadd.f32 %v2054, %v2156
    %v2177 = vadd.f32 %v2146, %v2155
    %v2178 = vadd.f32 %v2056, %v2156
    %v2179 = vadd.f32 %v2147, %v2155
    %v2180 = vadd.f32 %v2059, %v2156
    %v2181 = vadd.f32 %v2148, %v2155
    %v2182 = vadd.f32 %v2061, %v2156
    %v2183 = vadd.f32 %v2149, %v2155
    %v2184 = vadd.f32 %v2064, %v2156
    %v2185 = vadd.f32 %v2150, %v2155
    %v2186 = vadd.f32 %v2066, %v2156
    %v2187 = vadd.f32 %v2151, %v2155
    %v2188 = vadd.f32 %v2069, %v2156
    %v2189 = vadd.f32 %v2152, %v2155
    %v2190 = vadd.f32 %v2071, %v2156
    %v2191 = vpack.c.bf16 %v2161, %v2159
    %v2192 = vpack.c.bf16 %v2162, %v2160
    %v2193 = vpack.c.bf16 %v2165, %v2163
    %v2194 = vpack.c.bf16 %v2166, %v2164
    %v2195 = vpack.c.bf16 %v2169, %v2167
    %v2196 = vpack.c.bf16 %v2170, %v2168
    %v2197 = vpack.c.bf16 %v2173, %v2171
    %v2198 = vpack.c.bf16 %v2174, %v2172
    %v2199 = vpack.c.bf16 %v2177, %v2175
    %v2200 = vpack.c.bf16 %v2178, %v2176
    %v2201 = vpack.c.bf16 %v2181, %v2179
    %v2202 = vpack.c.bf16 %v2182, %v2180
    %v2203 = vpack.c.bf16 %v2185, %v2183
    %v2204 = vpack.c.bf16 %v2186, %v2184
    %v2205 = vpack.c.bf16 %v2189, %v2187
    %v2206 = vpack.c.bf16 %v2190, %v2188
    %v2207 = vld [vmem:[#allocation7] sm:$0xf]
    %v2208 = vld [vmem:[#allocation7 + $0x4] sm:$0xf]
    %v2209 = vld [vmem:[#allocation7 + $0x8] sm:$0xf]
    %v2210 = vld [vmem:[#allocation7 + $0xc] sm:$0xf]
    %v2211 = vld [vmem:[#allocation7 + $0x10] sm:$0xf]
    %v2212 = vld [vmem:[#allocation7 + $0x14] sm:$0xf]
    %v2213 = vld [vmem:[#allocation7 + $0x18] sm:$0xf]
    %v2214 = vld [vmem:[#allocation7 + $0x1c] sm:$0xf]
    %v2215 = vld [vmem:[#allocation7 + $0x20] sm:$0xf]
    %v2216 = vld [vmem:[#allocation7 + $0x24] sm:$0xf]
    %v2217 = vld [vmem:[#allocation7 + $0x28] sm:$0xf]
    %v2218 = vld [vmem:[#allocation7 + $0x2c] sm:$0xf]
    %v2219 = vld [vmem:[#allocation7 + $0x30] sm:$0xf]
    %v2220 = vld [vmem:[#allocation7 + $0x34] sm:$0xf]
    %v2221 = vld [vmem:[#allocation7 + $0x38] sm:$0xf]
    %v2222 = vld [vmem:[#allocation7 + $0x3c] sm:$0xf]
    %v2223 = vld [vmem:[#allocation7 + $0x40] sm:$0xf]
    %v2224 = vld [vmem:[#allocation7 + $0x44] sm:$0xf]
    %v2225 = vld [vmem:[#allocation7 + $0x48] sm:$0xf]
    %v2226 = vld [vmem:[#allocation7 + $0x4c] sm:$0xf]
    %v2227 = vld [vmem:[#allocation7 + $0x50] sm:$0xf]
    %v2228 = vld [vmem:[#allocation7 + $0x54] sm:$0xf]
    %v2229 = vld [vmem:[#allocation7 + $0x58] sm:$0xf]
    %v2230 = vld [vmem:[#allocation7 + $0x5c] sm:$0xf]
    %v2231 = vld [vmem:[%s9] sm:$0x1]
    %v2233 = vperm.slane %v2231, 0
    %v2259 = vunpack.c.l.b16 %v2207
    %v2260 = vunpack.c.l.b16 %v2208
    %v2261 = vunpack.c.l.b16 %v2209
    %v2262 = vunpack.c.l.b16 %v2210
    %v2263 = vunpack.c.l.b16 %v2211
    %v2264 = vunpack.c.l.b16 %v2212
    %v2265 = vunpack.c.l.b16 %v2213
    %v2266 = vunpack.c.l.b16 %v2214
    %v2267 = vunpack.c.l.b16 %v2215
    %v2268 = vunpack.c.l.b16 %v2216
    %v2269 = vunpack.c.l.b16 %v2217
    %v2270 = vunpack.c.l.b16 %v2218
    %v2271 = vunpack.c.l.b16 %v2219
    %v2272 = vunpack.c.l.b16 %v2220
    %v2273 = vunpack.c.l.b16 %v2221
    %v2274 = vunpack.c.l.b16 %v2222
    %v2275 = vunpack.c.l.b16 %v2223
    %v2276 = vunpack.c.l.b16 %v2224
    %v2277 = vunpack.c.l.b16 %v2225
    %v2278 = vunpack.c.l.b16 %v2226
    %v2279 = vunpack.c.l.b16 %v2227
    %v2280 = vunpack.c.l.b16 %v2228
    %v2281 = vunpack.c.l.b16 %v2229
    %v2282 = vunpack.c.l.b16 %v2230
    %v2283 = vpack.c.b16 %v2260, %v2259
    %v2284 = vpack.c.b16 %v2262, %v2261
    %v2285 = vpack.c.b16 %v2264, %v2263
    %v2286 = vpack.c.b16 %v2266, %v2265
    %v2287 = vpack.c.b16 %v2268, %v2267
    %v2288 = vpack.c.b16 %v2270, %v2269
    %v2289 = vpack.c.b16 %v2272, %v2271
    %v2290 = vpack.c.b16 %v2274, %v2273
    %v2291 = vpack.c.b16 %v2276, %v2275
    %v2292 = vpack.c.b16 %v2278, %v2277
    %v2293 = vpack.c.b16 %v2280, %v2279
    %v2294 = vpack.c.b16 %v2282, %v2281
    %v2308 = vsel %vm704, %v2192, 0
    %v2311 = vsel %vm704, %v2194, 0
    %v2314 = vsel %vm704, %v2196, 0
    %v2317 = vsel %vm704, %v2198, 0
    %v2320 = vsel %vm704, %v2200, 0
    %v2323 = vsel %vm704, %v2202, 0
    %v2326 = vsel %vm704, %v2204, 0
    %v2329 = vsel %vm704, %v2206, 0
    %2331 = vmatpush.bf16.msra.mxu0 %v2290
    %2332 = vmatpush.bf16.msra.mxu0 %v2289
    %2333 = vmatpush.bf16.msra.mxu0 %v2288
    %2334 = vmatpush.bf16.msra.mxu0 %v2287
    %2335 = vmatpush.bf16.msra.mxu0 %v2286
    %2336 = vmatpush.bf16.msra.mxu0 %v2285
    %2337 = vmatpush.bf16.msra.mxu0 %v2284
    %2338 = vmatpush.bf16.msra.mxu0 %v2283
    %2339 = vmatmul.bf16.gmra.mxu0 %v2191
    %v2340 = vpop.f32.mrf.mxu0
    %v2341 = vadd.f32 %v2233, %v2340
    %v2342 = vpop.f32.mrf.mxu0
    %v2343 = vadd.f32 %v2233, %v2342
    %2344 = vmatmul.bf16.gmra.mxu0 %v2193
    %v2345 = vpop.f32.mrf.mxu0
    %v2346 = vadd.f32 %v2233, %v2345
    %v2347 = vpop.f32.mrf.mxu0
    %v2348 = vadd.f32 %v2233, %v2347
    %2349 = vmatmul.bf16.gmra.mxu0 %v2195
    %v2350 = vpop.f32.mrf.mxu0
    %v2351 = vadd.f32 %v2233, %v2350
    %v2352 = vpop.f32.mrf.mxu0
    %v2353 = vadd.f32 %v2233, %v2352
    %2354 = vmatmul.bf16.gmra.mxu0 %v2197
    %v2355 = vpop.f32.mrf.mxu0
    %v2356 = vadd.f32 %v2233, %v2355
    %v2357 = vpop.f32.mrf.mxu0
    %v2358 = vadd.f32 %v2233, %v2357
    %2359 = vmatmul.bf16.gmra.mxu0 %v2199
    %v2360 = vpop.f32.mrf.mxu0
    %v2361 = vadd.f32 %v2233, %v2360
    %v2362 = vpop.f32.mrf.mxu0
    %v2363 = vadd.f32 %v2233, %v2362
    %2364 = vmatmul.bf16.gmra.mxu0 %v2201
    %v2365 = vpop.f32.mrf.mxu0
    %v2366 = vadd.f32 %v2233, %v2365
    %v2367 = vpop.f32.mrf.mxu0
    %v2368 = vadd.f32 %v2233, %v2367
    %2369 = vmatmul.bf16.gmra.mxu0 %v2203
    %v2370 = vpop.f32.mrf.mxu0
    %v2371 = vadd.f32 %v2233, %v2370
    %v2372 = vpop.f32.mrf.mxu0
    %v2373 = vadd.f32 %v2233, %v2372
    %2374 = vmatmul.bf16.gmra.mxu0 %v2205
    %v2375 = vpop.f32.mrf.mxu0
    %v2376 = vadd.f32 %v2233, %v2375
    %v2377 = vpop.f32.mrf.mxu0
    %v2378 = vadd.f32 %v2233, %v2377
    %2379 = vdwg.mxu0
    %2380 = vmatpush.bf16.msra.mxu0 0
    %2381 = vmatpush.bf16.msra.mxu0 0
    %2382 = vmatpush.bf16.msra.mxu0 0
    %2383 = vmatpush.bf16.msra.mxu0 0
    %2384 = vmatpush.bf16.msra.mxu0 %v2294
    %2385 = vmatpush.bf16.msra.mxu0 %v2293
    %2386 = vmatpush.bf16.msra.mxu0 %v2292
    %2387 = vmatpush.bf16.msra.mxu0 %v2291
    %2388 = vmatmul.bf16.gmra.mxu0 %v2308
    %v2389 = vpop.f32.mrf.mxu0
    %v2390 = vadd.f32 %v2341, %v2389
    %v2391 = vpop.f32.mrf.mxu0
    %v2392 = vadd.f32 %v2343, %v2391
    %2393 = vmatmul.bf16.gmra.mxu0 %v2311
    %v2394 = vpop.f32.mrf.mxu0
    %v2395 = vadd.f32 %v2346, %v2394
    %v2396 = vpop.f32.mrf.mxu0
    %v2397 = vadd.f32 %v2348, %v2396
    %2398 = vmatmul.bf16.gmra.mxu0 %v2314
    %v2399 = vpop.f32.mrf.mxu0
    %v2400 = vadd.f32 %v2351, %v2399
    %v2401 = vpop.f32.mrf.mxu0
    %v2402 = vadd.f32 %v2353, %v2401
    %2403 = vmatmul.bf16.gmra.mxu0 %v2317
    %v2404 = vpop.f32.mrf.mxu0
    %v2405 = vadd.f32 %v2356, %v2404
    %v2406 = vpop.f32.mrf.mxu0
    %v2407 = vadd.f32 %v2358, %v2406
    %2408 = vmatmul.bf16.gmra.mxu0 %v2320
    %v2409 = vpop.f32.mrf.mxu0
    %v2410 = vadd.f32 %v2361, %v2409
    %v2411 = vpop.f32.mrf.mxu0
    %v2412 = vadd.f32 %v2363, %v2411
    %2413 = vmatmul.bf16.gmra.mxu0 %v2323
    %v2414 = vpop.f32.mrf.mxu0
    %v2415 = vadd.f32 %v2366, %v2414
    %v2416 = vpop.f32.mrf.mxu0
    %v2417 = vadd.f32 %v2368, %v2416
    %2418 = vmatmul.bf16.gmra.mxu0 %v2326
    %v2419 = vpop.f32.mrf.mxu0
    %v2420 = vadd.f32 %v2371, %v2419
    %v2421 = vpop.f32.mrf.mxu0
    %v2422 = vadd.f32 %v2373, %v2421
    %2423 = vmatmul.bf16.gmra.mxu0 %v2329
    %v2424 = vpop.f32.mrf.mxu0
    %v2425 = vadd.f32 %v2376, %v2424
    %v2426 = vpop.f32.mrf.mxu0
    %v2427 = vadd.f32 %v2378, %v2426
    %2428 = vdwg.mxu0
    %2429 = vst [vmem:[%s10] sm:$0xff] %v2390
    %2430 = vst [vmem:[%s10 + $0x8] sm:$0xff] %v2392
    %2431 = vst [vmem:[%s10 + $0x10] sm:$0xff] %v2395
    %2432 = vst [vmem:[%s10 + $0x18] sm:$0xff] %v2397
    %2433 = vst [vmem:[%s10 + $0x20] sm:$0xff] %v2400
    %2434 = vst [vmem:[%s10 + $0x28] sm:$0xff] %v2402
    %2435 = vst [vmem:[%s10 + $0x30] sm:$0xff] %v2405
    %2436 = vst [vmem:[%s10 + $0x38] sm:$0xff] %v2407
    %2437 = vst [vmem:[%s10 + $0x40] sm:$0xff] %v2410
    %2438 = vst [vmem:[%s10 + $0x48] sm:$0xff] %v2412
    %2439 = vst [vmem:[%s10 + $0x50] sm:$0xff] %v2415
    %2440 = vst [vmem:[%s10 + $0x58] sm:$0xff] %v2417
    %2441 = vst [vmem:[%s10 + $0x60] sm:$0xff] %v2420
    %2442 = vst [vmem:[%s10 + $0x68] sm:$0xff] %v2422
    %2443 = vst [vmem:[%s10 + $0x70] sm:$0xff] %v2425
    %2444 = vst [vmem:[%s10 + $0x78] sm:$0xff] %v2427
    // Predicated region
    $region58: #{_lambda_.1} parent=1 // pred_check
      _
    $region59: #{_lambda_.1} parent=1 // pred_check_branch
      %2446 = sbr.rel (0) target = $region61
    $region60: #{_lambda_.1} parent=1 // pred_region
      _
    $region61: #{_lambda_.1} parent=1 // pred_fallthru
      _
    // Predicated region
    $region62: #{_lambda_.1} parent=1 // pred_check
      _
    $region63: #{_lambda_.1} parent=1 // pred_check_branch
      %2448 = sbr.rel (0) target = $region65
    $region64: #{_lambda_.1} parent=1 // pred_region
      _
    $region65: #{_lambda_.1} parent=1 // pred_fallthru
      _
    %2449 = vsyncpa [#allocation3], 1
    %2450 = vsyncpa [#allocation5], 1
    %2451 = vsyncpa [#allocation8], 1

</llo_original>
